<compile_context>
chip_gen: v7x
topology: tpu7x:2x2x1
jax: 0.10.0
libtpu: 0.0.40
codegen_flags: <defaults>
</compile_context>

<pallas_src>
import jax
import jax.numpy as jnp
from jax.experimental import pallas as pl
from jax.experimental.pallas import tpu as pltpu

LANE = 128


def _round_up(x, m):
    return (x + m - 1) // m * m


def _cdiv(a, b):
    return (a + b - 1) // b


def _vmem_block_bytes(shape, itemsize):
    """VMEM footprint of one buffer of `shape`, incl. (sublane, lane) tile padding."""
    shape = (1,) * max(0, 2 - len(shape)) + tuple(shape)
    sub = 32 // itemsize            # 8 sublanes for f32, 16 for bf16 (packed)
    lead = 1
    for d in shape[:-2]:
        lead *= int(d)
    return lead * _round_up(int(shape[-2]), sub) * _round_up(int(shape[-1]), LANE) * itemsize


def _pick_row_tile(n_batch, ho, wb, cin, tn, stride, kh):
    """Output rows per grid step: enough grid steps to pipeline / feed both v7x TCs,
    while keeping the per-step VMEM footprint small."""
    tr = ho
    while tr > 1 and n_batch * _cdiv(ho, tr) < 8:
        tr = _cdiv(tr, 2)

    def footprint(t):
        rows_in = stride * t + kh + 1
        m = t * wb
        return (rows_in * wb * _round_up(cin, LANE) * 2     # bf16 input block
                + m * tn * 4 + m * tn * 2)                  # f32 acc + bf16 out

    while tr > 1 and footprint(tr) > (6 << 20):
        tr = _cdiv(tr, 2)
    return max(tr, 1)


# ----------------------------- Pallas kernel --------------------------------
def _make_conv_kernel(kh, kw, wb, stride, m, relu):
    """Fused im2col + matmul + BN-shift (+ ReLU) over one activation row block.

    Refs:
      x_ref:     (1, Lin, Cin)     bf16  flat (rows_in*Wb, Cin) row block with halo
      w_ref:     (KH*KW, Cin, TN)  bf16  conv weights, BN scale pre-folded
      shift_ref: (1, TN)           f32   folded BN shift (incl. conv bias)
      o_ref:     (1, M, TN)        bf16  output row block (flat rows*width)
    """
    def kernel(x_ref, w_ref, shift_ref, o_ref):
        tn = o_ref.shape[-1]
        acc = jnp.zeros((m, tn), jnp.float32)
        for i in range(kh):
            for j in range(kw):
                off = i * wb + j
                idx = pl.ds(off, m) if stride == 1 else pl.ds(off, m, stride)
                xv = x_ref[0, idx, :]                        # (M, Cin) tap view
                acc = acc + jnp.dot(xv, w_ref[i * kw + j],
                                    preferred_element_type=jnp.float32)
        out = acc + shift_ref[...]
        if relu:
            out = jnp.maximum(out, 0.0)
        o_ref[0] = out.astype(o_ref.dtype)
    return kernel


# ------------------------------ JAX wrapper ----------------------------------
def conv2d_bn_relu(x_nchw, weight, bias=None, bn_gamma=None, bn_beta=None,
                   bn_mean=None, bn_var=None, stride=1, padding=0, eps=1e-5,
                   relu=True):
    """Equivalent of Conv2d(..., bias, norm='BN' (eval mode), activation='ReLU')."""
    # TODO(synk): dilation != 1 and groups != 1 are not implemented.
    N, Cin, H, W = x_nchw.shape
    Cout, _, KH, KW = weight.shape
    Ho = (H + 2 * padding - KH) // stride + 1
    Wo = (W + 2 * padding - KW) // stride + 1

    # Fold eval-BN + conv bias: y = scale*conv(x) + shift, scale folded into W.
    if bias is None:
        bias = jnp.zeros((Cout,), jnp.float32)
    if bn_gamma is None:
        scale = jnp.ones((Cout,), jnp.float32)
        shift = bias.astype(jnp.float32)
    else:
        scale = (bn_gamma / jnp.sqrt(bn_var + eps)).astype(jnp.float32)
        shift = (bn_beta + scale * (bias - bn_mean)).astype(jnp.float32)

    # Cout padding / tile: 128 lanes; 256-aligned above 128 (v6e/v7x MXU N dim).
    if Cout <= LANE:
        Cp = tn = LANE
    else:
        Cp, tn = _round_up(Cout, 2 * LANE), 2 * LANE
    n_co = Cp // tn

    # Row tiling.  Each step computes Wb columns per row (first Wo valid) so
    # every tap is a flat window of the block.
    Wb = W + 2 * padding
    TR = _pick_row_tile(N, Ho, Wb, Cin, tn, stride, KH)
    n_rb = _cdiv(Ho, TR)
    M = TR * Wb
    lin_needed = (KH - 1) * Wb + (KW - 1) + stride * (M - 1) + 1
    rows_in = _cdiv(lin_needed, Wb)
    Lin = rows_in * Wb

    # Activation: NCHW -> NHWC + bf16 cast (fused pass), spatial zero-pad,
    # halo-replicated row blocks, flattened to (rows*width, Cin) per block.
    x_nhwc = jnp.transpose(x_nchw, (0, 2, 3, 1)).astype(jnp.bfloat16)
    Hp = (n_rb - 1) * TR * stride + rows_in
    pad_bottom = max(Hp, H + 2 * padding) - H - padding
    xp = jnp.pad(x_nhwc, ((0, 0), (padding, pad_bottom),
                          (padding, Wb - W - padding), (0, 0)))
    row_idx = jnp.arange(n_rb)[:, None] * (TR * stride) + jnp.arange(rows_in)[None, :]
    x_blk = jnp.take(xp, row_idx, axis=1)               # (N, n_rb, rows_in, Wb, Cin)
    x_blk = x_blk.reshape(N * n_rb, Lin, Cin)
    NB = N * n_rb

    # Weights: (Cout,Cin,KH,KW) -> (KH*KW, Cin, Cp) with BN scale folded, bf16.
    w_t = jnp.transpose(weight, (2, 3, 1, 0)).reshape(KH * KW, Cin, Cout)
    w_p = jnp.pad((w_t * scale[None, None, :]).astype(jnp.bfloat16),
                  ((0, 0), (0, 0), (0, Cp - Cout)))
    shift_p = jnp.pad(shift.reshape(1, Cout), ((0, 0), (0, Cp - Cout)))

    # VMEM budget: double-buffered blocks + slack, capped for v7x (64 MiB / TC).
    blk_bytes = (_vmem_block_bytes((1, Lin, Cin), 2)
                 + _vmem_block_bytes((KH * KW, Cin, tn), 2)
                 + _vmem_block_bytes((1, tn), 4)
                 + _vmem_block_bytes((1, M, tn), 2))
    vmem_limit = int(min(48 << 20, max(8 << 20, 4 * blk_bytes + (2 << 20))))

    cost = pl.CostEstimate(
        flops=2 * NB * n_co * M * (KH * KW * Cin) * tn,
        transcendentals=0,
        bytes_accessed=int(x_blk.size * 2 * n_co + w_p.size * 2
                           + shift_p.size * 4 + NB * M * Cp * 2),
    )

    kernel = _make_conv_kernel(KH, KW, Wb, stride, M, relu)
    out_blk = pl.pallas_call(
        kernel,
        out_shape=jax.ShapeDtypeStruct((NB, M, Cp), jnp.bfloat16),
        grid_spec=pl.GridSpec(
            grid=(NB, n_co),
            in_specs=[
                pl.BlockSpec((1, Lin, Cin), lambda b, c: (b, 0, 0)),
                pl.BlockSpec((KH * KW, Cin, tn), lambda b, c: (0, 0, c)),
                pl.BlockSpec((1, tn), lambda b, c: (0, c)),
            ],
            out_specs=pl.BlockSpec((1, M, tn), lambda b, c: (b, 0, c)),
        ),
        compiler_params=pltpu.CompilerParams(
            dimension_semantics=("parallel", "parallel"),
            vmem_limit_bytes=vmem_limit,
        ),
        cost_estimate=cost,
    )(x_blk, w_p, shift_p)

    # Un-flatten, drop junk columns / padded rows / padded channels, NCHW f32.
    out = out_blk.reshape(N, n_rb, TR, Wb, Cp)[:, :, :, :Wo, :Cout]
    out = out.reshape(N, n_rb * TR, Wo, Cout)[:, :Ho]
    return jnp.transpose(out, (0, 3, 1, 2)).astype(jnp.float32)


# ------------------------------- main ----------------------------------------
if __name__ == "__main__":
    key = jax.random.PRNGKey(0)
    k_x, k_w, k_b, k_g, k_bt, k_m, k_v = jax.random.split(key, 7)

    # Module config: Conv2d(4, 8, kernel_size=3, stride=1, padding=1,
    #                       bias=True, norm='BN' (eval), activation='ReLU')
    N, Cin, H, W = 2, 4, 16, 16
    Cout, KH, KW = 8, 3, 3
    stride, padding = 1, 1
    eps = 1e-5

    x = jax.random.normal(k_x, (N, Cin, H, W), dtype=jnp.float32)
    weight = jax.random.normal(k_w, (Cout, Cin, KH, KW), dtype=jnp.float32) * 0.1
    bias = jax.random.normal(k_b, (Cout,), dtype=jnp.float32) * 0.1
    bn_gamma = 1.0 + 0.1 * jax.random.normal(k_g, (Cout,), dtype=jnp.float32)
    bn_beta = 0.1 * jax.random.normal(k_bt, (Cout,), dtype=jnp.float32)
    bn_mean = 0.1 * jax.random.normal(k_m, (Cout,), dtype=jnp.float32)
    bn_var = jnp.abs(jax.random.normal(k_v, (Cout,), dtype=jnp.float32)) + 0.5

    out = conv2d_bn_relu(x, weight, bias, bn_gamma, bn_beta, bn_mean, bn_var,
                         stride=stride, padding=padding, eps=eps)
    out = jax.block_until_ready(out)
    assert out.shape == (N, Cout, H, W)

    # --- Reference 1: same math as the kernel (bf16 operands, f32 accumulate) ---
    scale = bn_gamma / jnp.sqrt(bn_var + eps)
    shift = bn_beta + scale * (bias - bn_mean)
    w_folded = (weight * scale[:, None, None, None]).astype(jnp.bfloat16)
    ref_conv_bf16 = jax.lax.conv_general_dilated(
        x.astype(jnp.bfloat16), w_folded,
        window_strides=(stride, stride),
        padding=[(padding, padding), (padding, padding)],
        dimension_numbers=("NCHW", "OIHW", "NCHW"),
        preferred_element_type=jnp.float32)
    ref_bf16 = jnp.maximum(ref_conv_bf16 + shift.reshape(1, Cout, 1, 1), 0.0)
    assert jnp.allclose(out, ref_bf16, atol=2e-2, rtol=2e-2)

    # --- Reference 2: full-precision f32 reference (loose tol for bf16 path) ---
    ref_conv_f32 = jax.lax.conv_general_dilated(
        x, weight, window_strides=(stride, stride),
        padding=[(padding, padding), (padding, padding)],
        dimension_numbers=("NCHW", "OIHW", "NCHW"))
    ref_f32 = jnp.maximum(ref_conv_f32 * scale.reshape(1, Cout, 1, 1)
                          + shift.reshape(1, Cout, 1, 1), 0.0)
    assert jnp.allclose(out, ref_f32, atol=1e-1, rtol=1e-1)

    print("KERNEL_OK")
</pallas_src>

<mosaic_0001>
module attributes {stable_mosaic.version = 11 : i64} {
  func.func @kernel(%arg0: i32, %arg1: i32, %arg2: memref<1x126x4xbf16, #tpu.memory_space<vmem>>, %arg3: memref<9x4x128xbf16, #tpu.memory_space<vmem>>, %arg4: memref<1x128xf32, #tpu.memory_space<vmem>>, %arg5: memref<1x72x128xbf16, #tpu.memory_space<vmem>>) attributes {dimension_semantics = [#tpu.dimension_semantics<parallel>, #tpu.dimension_semantics<parallel>], iteration_bounds = array<i64: 8, 1>, scalar_prefetch = 0 : i64, scratch_operands = 0 : i64, tpu.core_type = #tpu.core_type<tc>, window_params = [{transform_indices = @transform_0, window_bounds = array<i64: 1, 126, 4>}, {transform_indices = @transform_1, window_bounds = array<i64: 9, 4, 128>}, {transform_indices = @transform_2, window_bounds = array<i64: 1, 128>}, {transform_indices = @transform_3, window_bounds = array<i64: 1, 72, 128>}]} {
    %cst = arith.constant 0.000000e+00 : f32
    %0 = vector.broadcast %cst : f32 to vector<72x128xf32>
    %c0 = arith.constant 0 : index
    %c0_0 = arith.constant 0 : index
    %c0_1 = arith.constant 0 : index
    %1 = vector.load %arg2[%c0, %c0_0, %c0_1] : memref<1x126x4xbf16, #tpu.memory_space<vmem>>, vector<1x72x4xbf16>
    %2 = vector.shape_cast %1 : vector<1x72x4xbf16> to vector<72x4xbf16>
    %c0_2 = arith.constant 0 : index
    %c0_3 = arith.constant 0 : index
    %c0_4 = arith.constant 0 : index
    %3 = vector.load %arg3[%c0_2, %c0_3, %c0_4] : memref<9x4x128xbf16, #tpu.memory_space<vmem>>, vector<1x4x128xbf16>
    %4 = vector.shape_cast %3 : vector<1x4x128xbf16> to vector<4x128xbf16>
    %cst_5 = arith.constant dense<0.000000e+00> : vector<72x128xf32>
    %5 = tpu.matmul %2, %4, %cst_5 {dimension_numbers = #tpu.dot_dimension_numbers<[1], [0], [0], [1], [0, 0, 1, 1], [], []>} : vector<72x4xbf16>, vector<4x128xbf16>, vector<72x128xf32> -> vector<72x128xf32>
    %6 = arith.addf %0, %5 : vector<72x128xf32>
    %c0_6 = arith.constant 0 : index
    %c1 = arith.constant 1 : index
    %c0_7 = arith.constant 0 : index
    %7 = vector.load %arg2[%c0_6, %c1, %c0_7] : memref<1x126x4xbf16, #tpu.memory_space<vmem>>, vector<1x72x4xbf16>
    %8 = vector.shape_cast %7 : vector<1x72x4xbf16> to vector<72x4xbf16>
    %c1_8 = arith.constant 1 : index
    %c0_9 = arith.constant 0 : index
    %c0_10 = arith.constant 0 : index
    %9 = vector.load %arg3[%c1_8, %c0_9, %c0_10] : memref<9x4x128xbf16, #tpu.memory_space<vmem>>, vector<1x4x128xbf16>
    %10 = vector.shape_cast %9 : vector<1x4x128xbf16> to vector<4x128xbf16>
    %cst_11 = arith.constant dense<0.000000e+00> : vector<72x128xf32>
    %11 = tpu.matmul %8, %10, %cst_11 {dimension_numbers = #tpu.dot_dimension_numbers<[1], [0], [0], [1], [0, 0, 1, 1], [], []>} : vector<72x4xbf16>, vector<4x128xbf16>, vector<72x128xf32> -> vector<72x128xf32>
    %12 = arith.addf %6, %11 : vector<72x128xf32>
    %c0_12 = arith.constant 0 : index
    %c2 = arith.constant 2 : index
    %c0_13 = arith.constant 0 : index
    %13 = vector.load %arg2[%c0_12, %c2, %c0_13] : memref<1x126x4xbf16, #tpu.memory_space<vmem>>, vector<1x72x4xbf16>
    %14 = vector.shape_cast %13 : vector<1x72x4xbf16> to vector<72x4xbf16>
    %c2_14 = arith.constant 2 : index
    %c0_15 = arith.constant 0 : index
    %c0_16 = arith.constant 0 : index
    %15 = vector.load %arg3[%c2_14, %c0_15, %c0_16] : memref<9x4x128xbf16, #tpu.memory_space<vmem>>, vector<1x4x128xbf16>
    %16 = vector.shape_cast %15 : vector<1x4x128xbf16> to vector<4x128xbf16>
    %cst_17 = arith.constant dense<0.000000e+00> : vector<72x128xf32>
    %17 = tpu.matmul %14, %16, %cst_17 {dimension_numbers = #tpu.dot_dimension_numbers<[1], [0], [0], [1], [0, 0, 1, 1], [], []>} : vector<72x4xbf16>, vector<4x128xbf16>, vector<72x128xf32> -> vector<72x128xf32>
    %18 = arith.addf %12, %17 : vector<72x128xf32>
    %c0_18 = arith.constant 0 : index
    %c18 = arith.constant 18 : index
    %c0_19 = arith.constant 0 : index
    %19 = vector.load %arg2[%c0_18, %c18, %c0_19] : memref<1x126x4xbf16, #tpu.memory_space<vmem>>, vector<1x72x4xbf16>
    %20 = vector.shape_cast %19 : vector<1x72x4xbf16> to vector<72x4xbf16>
    %c3 = arith.constant 3 : index
    %c0_20 = arith.constant 0 : index
    %c0_21 = arith.constant 0 : index
    %21 = vector.load %arg3[%c3, %c0_20, %c0_21] : memref<9x4x128xbf16, #tpu.memory_space<vmem>>, vector<1x4x128xbf16>
    %22 = vector.shape_cast %21 : vector<1x4x128xbf16> to vector<4x128xbf16>
    %cst_22 = arith.constant dense<0.000000e+00> : vector<72x128xf32>
    %23 = tpu.matmul %20, %22, %cst_22 {dimension_numbers = #tpu.dot_dimension_numbers<[1], [0], [0], [1], [0, 0, 1, 1], [], []>} : vector<72x4xbf16>, vector<4x128xbf16>, vector<72x128xf32> -> vector<72x128xf32>
    %24 = arith.addf %18, %23 : vector<72x128xf32>
    %c0_23 = arith.constant 0 : index
    %c19 = arith.constant 19 : index
    %c0_24 = arith.constant 0 : index
    %25 = vector.load %arg2[%c0_23, %c19, %c0_24] : memref<1x126x4xbf16, #tpu.memory_space<vmem>>, vector<1x72x4xbf16>
    %26 = vector.shape_cast %25 : vector<1x72x4xbf16> to vector<72x4xbf16>
    %c4 = arith.constant 4 : index
    %c0_25 = arith.constant 0 : index
    %c0_26 = arith.constant 0 : index
    %27 = vector.load %arg3[%c4, %c0_25, %c0_26] : memref<9x4x128xbf16, #tpu.memory_space<vmem>>, vector<1x4x128xbf16>
    %28 = vector.shape_cast %27 : vector<1x4x128xbf16> to vector<4x128xbf16>
    %cst_27 = arith.constant dense<0.000000e+00> : vector<72x128xf32>
    %29 = tpu.matmul %26, %28, %cst_27 {dimension_numbers = #tpu.dot_dimension_numbers<[1], [0], [0], [1], [0, 0, 1, 1], [], []>} : vector<72x4xbf16>, vector<4x128xbf16>, vector<72x128xf32> -> vector<72x128xf32>
    %30 = arith.addf %24, %29 : vector<72x128xf32>
    %c0_28 = arith.constant 0 : index
    %c20 = arith.constant 20 : index
    %c0_29 = arith.constant 0 : index
    %31 = vector.load %arg2[%c0_28, %c20, %c0_29] : memref<1x126x4xbf16, #tpu.memory_space<vmem>>, vector<1x72x4xbf16>
    %32 = vector.shape_cast %31 : vector<1x72x4xbf16> to vector<72x4xbf16>
    %c5 = arith.constant 5 : index
    %c0_30 = arith.constant 0 : index
    %c0_31 = arith.constant 0 : index
    %33 = vector.load %arg3[%c5, %c0_30, %c0_31] : memref<9x4x128xbf16, #tpu.memory_space<vmem>>, vector<1x4x128xbf16>
    %34 = vector.shape_cast %33 : vector<1x4x128xbf16> to vector<4x128xbf16>
    %cst_32 = arith.constant dense<0.000000e+00> : vector<72x128xf32>
    %35 = tpu.matmul %32, %34, %cst_32 {dimension_numbers = #tpu.dot_dimension_numbers<[1], [0], [0], [1], [0, 0, 1, 1], [], []>} : vector<72x4xbf16>, vector<4x128xbf16>, vector<72x128xf32> -> vector<72x128xf32>
    %36 = arith.addf %30, %35 : vector<72x128xf32>
    %c0_33 = arith.constant 0 : index
    %c36 = arith.constant 36 : index
    %c0_34 = arith.constant 0 : index
    %37 = vector.load %arg2[%c0_33, %c36, %c0_34] : memref<1x126x4xbf16, #tpu.memory_space<vmem>>, vector<1x72x4xbf16>
    %38 = vector.shape_cast %37 : vector<1x72x4xbf16> to vector<72x4xbf16>
    %c6 = arith.constant 6 : index
    %c0_35 = arith.constant 0 : index
    %c0_36 = arith.constant 0 : index
    %39 = vector.load %arg3[%c6, %c0_35, %c0_36] : memref<9x4x128xbf16, #tpu.memory_space<vmem>>, vector<1x4x128xbf16>
    %40 = vector.shape_cast %39 : vector<1x4x128xbf16> to vector<4x128xbf16>
    %cst_37 = arith.constant dense<0.000000e+00> : vector<72x128xf32>
    %41 = tpu.matmul %38, %40, %cst_37 {dimension_numbers = #tpu.dot_dimension_numbers<[1], [0], [0], [1], [0, 0, 1, 1], [], []>} : vector<72x4xbf16>, vector<4x128xbf16>, vector<72x128xf32> -> vector<72x128xf32>
    %42 = arith.addf %36, %41 : vector<72x128xf32>
    %c0_38 = arith.constant 0 : index
    %c37 = arith.constant 37 : index
    %c0_39 = arith.constant 0 : index
    %43 = vector.load %arg2[%c0_38, %c37, %c0_39] : memref<1x126x4xbf16, #tpu.memory_space<vmem>>, vector<1x72x4xbf16>
    %44 = vector.shape_cast %43 : vector<1x72x4xbf16> to vector<72x4xbf16>
    %c7 = arith.constant 7 : index
    %c0_40 = arith.constant 0 : index
    %c0_41 = arith.constant 0 : index
    %45 = vector.load %arg3[%c7, %c0_40, %c0_41] : memref<9x4x128xbf16, #tpu.memory_space<vmem>>, vector<1x4x128xbf16>
    %46 = vector.shape_cast %45 : vector<1x4x128xbf16> to vector<4x128xbf16>
    %cst_42 = arith.constant dense<0.000000e+00> : vector<72x128xf32>
    %47 = tpu.matmul %44, %46, %cst_42 {dimension_numbers = #tpu.dot_dimension_numbers<[1], [0], [0], [1], [0, 0, 1, 1], [], []>} : vector<72x4xbf16>, vector<4x128xbf16>, vector<72x128xf32> -> vector<72x128xf32>
    %48 = arith.addf %42, %47 : vector<72x128xf32>
    %c0_43 = arith.constant 0 : index
    %c38 = arith.constant 38 : index
    %c0_44 = arith.constant 0 : index
    %49 = vector.load %arg2[%c0_43, %c38, %c0_44] : memref<1x126x4xbf16, #tpu.memory_space<vmem>>, vector<1x72x4xbf16>
    %50 = vector.shape_cast %49 : vector<1x72x4xbf16> to vector<72x4xbf16>
    %c8 = arith.constant 8 : index
    %c0_45 = arith.constant 0 : index
    %c0_46 = arith.constant 0 : index
    %51 = vector.load %arg3[%c8, %c0_45, %c0_46] : memref<9x4x128xbf16, #tpu.memory_space<vmem>>, vector<1x4x128xbf16>
    %52 = vector.shape_cast %51 : vector<1x4x128xbf16> to vector<4x128xbf16>
    %cst_47 = arith.constant dense<0.000000e+00> : vector<72x128xf32>
    %53 = tpu.matmul %50, %52, %cst_47 {dimension_numbers = #tpu.dot_dimension_numbers<[1], [0], [0], [1], [0, 0, 1, 1], [], []>} : vector<72x4xbf16>, vector<4x128xbf16>, vector<72x128xf32> -> vector<72x128xf32>
    %54 = arith.addf %48, %53 : vector<72x128xf32>
    %c0_48 = arith.constant 0 : index
    %c0_49 = arith.constant 0 : index
    %55 = vector.load %arg4[%c0_48, %c0_49] : memref<1x128xf32, #tpu.memory_space<vmem>>, vector<1x128xf32>
    %56 = vector.broadcast %55 : vector<1x128xf32> to vector<72x128xf32>
    %57 = arith.addf %54, %56 : vector<72x128xf32>
    %cst_50 = arith.constant 0.000000e+00 : f32
    %58 = vector.broadcast %cst_50 : f32 to vector<72x128xf32>
    %59 = arith.maximumf %57, %58 : vector<72x128xf32>
    %60 = arith.truncf %59 : vector<72x128xf32> to vector<72x128xbf16>
    %c0_51 = arith.constant 0 : index
    %c0_52 = arith.constant 0 : index
    %c0_53 = arith.constant 0 : index
    %61 = vector.load %arg5[%c0_51, %c0_52, %c0_53] : memref<1x72x128xbf16, #tpu.memory_space<vmem>>, vector<1x72x128xbf16>
    %62 = vector.shape_cast %61 : vector<1x72x128xbf16> to vector<72x128xbf16>
    %63 = vector.shape_cast %60 : vector<72x128xbf16> to vector<1x72x128xbf16>
    tpu.vector_store %arg5[%c0_51, %c0_52, %c0_53], %63 {strides = array<i32>} : memref<1x72x128xbf16, #tpu.memory_space<vmem>>, vector<1x72x128xbf16>,
    return
  }
  func.func @transform_0(%arg0: i32, %arg1: i32) -> (i32, i32, i32) {
    %c0_i32 = arith.constant 0 : i32
    %c0_i32_0 = arith.constant 0 : i32
    %c0_i32_1 = arith.constant 0 : i32
    return %arg0, %c0_i32, %c0_i32_0 : i32, i32, i32
  }
  func.func @transform_1(%arg0: i32, %arg1: i32) -> (i32, i32, i32) {
    %c0_i32 = arith.constant 0 : i32
    %c0_i32_0 = arith.constant 0 : i32
    %c0_i32_1 = arith.constant 0 : i32
    return %c0_i32, %c0_i32_0, %arg1 : i32, i32, i32
  }
  func.func @transform_2(%arg0: i32, %arg1: i32) -> (i32, i32) {
    %c0_i32 = arith.constant 0 : i32
    %c0_i32_0 = arith.constant 0 : i32
    return %c0_i32, %arg1 : i32, i32
  }
  func.func @transform_3(%arg0: i32, %arg1: i32) -> (i32, i32, i32) {
    %c0_i32 = arith.constant 0 : i32
    %c0_i32_0 = arith.constant 0 : i32
    return %arg0, %c0_i32, %arg1 : i32, i32, i32
  }
}

</mosaic_0001>

<llo_original>
// kernel: tpu_custom_call.1
$region0: #{tpu_custom_call.1}
  #allocation0 [shape = 'u32[]', space=smem, size = 0x4, offset = 0x4, fixed_abs, tag = 'smem constant byte address 0x4 - core index']
  #allocation1 [shape = 'u32[144,128]{1,0:T(1,128)}', space=vmem, size = 0x12000, scoped, tag = 'internal scratch']
  %s0 = inlined_call_operand.vmem [shape: bf16[8,126,4], index: 0, kind: input, shape index: {}]
  %s1 = inlined_call_operand.vmem [shape: bf16[9,4,128], index: 1, kind: input, shape index: {}]
  %s2 = inlined_call_operand.vmem [shape: f32[1,128], index: 2, kind: input, shape index: {}]
  %s3 = inlined_call_operand.hbm [shape: bf16[8,72,128], index: 3, kind: output, shape index: {}]
  %s4 = sld [smem:[#allocation0]]
  $region45: #{tpu_custom_call.1} parent=0
    _
  %s6 = ssub.s32 1, %s4
  %s7 = scalar_select 0, %s6, %s4
  $region1: #{tpu_custom_call.1} parent=0
    #allocation2 [shape = 'u8[36864]{0}', space=vmem, size = 0x9000, scoped, tag = 'output window, operand 0']
    #allocation3 [shape = 's32[2]{0}', space=sflag, size = 0x8, scoped, tag = 'scoped memory for tpu_custom_call.1']
    %8 = vsyncpa [#allocation3], 0
    %s9 = scalar_lea.sflag [#allocation3], 1
    %10 = vsyncpa %s9, 0
    loop: start=0, step=1, limit=10
    $region2: #{tpu_custom_call.1} parent=1 // loop_pre_header
      _
    $region3: #{tpu_custom_call.1} parent=1 // loop_header
      %s12 = sphi 0, %s16
      %p13 = scmp.ge.s32.totalorder %s12, 10
      %s19 = sphi 0, %s31
      %s20 = sphi 0, %s27
      %s21 = sphi 0, %s19
      %s22 = sphi 0, %s20
      %s23 = sphi 0, %s21
      %s24 = sphi 0, %s22
      %s34 = sphi 0, %s36
      %s37 = sphi 0, %s34
      %s38 = sphi 0, %s37
      %s54 = sphi 0, %s38
      %s60 = sphi 0, %s62
      %s63 = sphi 0, %s60
      %s64 = sphi 0, %s63
      %s80 = sphi 0, %s64
      %s86 = sphi 0, %s88
      %s89 = sphi 0, %s86
      %s90 = sphi 0, %s89
      %s106 = sphi 0, %s90
      %s114 = sphi 0, %s116
      %s117 = sphi 0, %s114
      %s118 = sphi 0, %s117
      %s134 = sphi 0, %s118
    $region4: #{tpu_custom_call.1} parent=1 // loop_header_branch
      %15 = sbr.rel (%p13) target = $region8
    $region5: #{tpu_custom_call.1} parent=1 // loop_body
      %s17 = ssub.s32 %s12, 1
      %s18 = ssub.s32 %s12, 2
      %s25 = sadd.s32 1, %s20
      %p26 = scmp.ge.s32.totalorder %s25, 1
      %s27 = scalar_select %p26, 0, %s25
      %s28 = sadd.s32 1, %s19
      %s29 = scalar_select %p26, %s28, %s19
      %p30 = scmp.ge.s32.totalorder %s29, 8
      %s31 = scalar_select %p30, 0, %s29
      %s32 = ssub.s32 %s19, %s31
      %p33 = scmp.eq.s32.totalorder %s32, 0
      %s35 = sadd.s32 %s34, 1
      %s36 = scalar_select %p33, %s34, %s35
      %p39 = pneg %p33
      %p40 = scmp.eq.s32.totalorder %s12, 7
      %p41 = por %p39, %p40
      %p42 = scmp.ne.s32.totalorder %s34, %s37
      %p43 = scmp.eq.s32.totalorder %s12, 0
      %p44 = por %p42, %p43
      %p45 = scmp.ne.s32.totalorder %s34, %s37
      %p46 = scmp.eq.s32.totalorder %s17, 7
      %p47 = por %p45, %p46
      %p48 = scmp.ne.s32.totalorder %s37, %s38
      %p49 = scmp.eq.s32.totalorder %s17, 0
      %p50 = por %p48, %p49
      %p51 = scmp.ne.s32.totalorder %s37, %s38
      %p52 = scmp.eq.s32.totalorder %s18, 7
      %p53 = por %p51, %p52
      %p55 = scmp.ne.s32.totalorder %s38, %s54
      %p56 = scmp.eq.s32.totalorder %s18, 0
      %p57 = por %p55, %p56
      %s58 = ssub.s32 %s20, %s27
      %p59 = scmp.eq.s32.totalorder %s58, 0
      %s61 = sadd.s32 %s60, 1
      %s62 = scalar_select %p59, %s60, %s61
      %p65 = pneg %p59
      %p66 = scmp.eq.s32.totalorder %s12, 7
      %p67 = por %p65, %p66
      %p68 = scmp.ne.s32.totalorder %s60, %s63
      %p69 = scmp.eq.s32.totalorder %s12, 0
      %p70 = por %p68, %p69
      %p71 = scmp.ne.s32.totalorder %s60, %s63
      %p72 = scmp.eq.s32.totalorder %s17, 7
      %p73 = por %p71, %p72
      %p74 = scmp.ne.s32.totalorder %s63, %s64
      %p75 = scmp.eq.s32.totalorder %s17, 0
      %p76 = por %p74, %p75
      %p77 = scmp.ne.s32.totalorder %s63, %s64
      %p78 = scmp.eq.s32.totalorder %s18, 7
      %p79 = por %p77, %p78
      %p81 = scmp.ne.s32.totalorder %s64, %s80
      %p82 = scmp.eq.s32.totalorder %s18, 0
      %p83 = por %p81, %p82
      %s84 = ssub.s32 %s20, %s27
      %p85 = scmp.eq.s32.totalorder %s84, 0
      %s87 = sadd.s32 %s86, 1
      %s88 = scalar_select %p85, %s86, %s87
      %p91 = pneg %p85
      %p92 = scmp.eq.s32.totalorder %s12, 7
      %p93 = por %p91, %p92
      %p94 = scmp.ne.s32.totalorder %s86, %s89
      %p95 = scmp.eq.s32.totalorder %s12, 0
      %p96 = por %p94, %p95
      %p97 = scmp.ne.s32.totalorder %s86, %s89
      %p98 = scmp.eq.s32.totalorder %s17, 7
      %p99 = por %p97, %p98
      %p100 = scmp.ne.s32.totalorder %s89, %s90
      %p101 = scmp.eq.s32.totalorder %s17, 0
      %p102 = por %p100, %p101
      %p103 = scmp.ne.s32.totalorder %s89, %s90
      %p104 = scmp.eq.s32.totalorder %s18, 7
      %p105 = por %p103, %p104
      %p107 = scmp.ne.s32.totalorder %s90, %s106
      %p108 = scmp.eq.s32.totalorder %s18, 0
      %p109 = por %p107, %p108
      %s110 = ssub.s32 %s19, %s31
      %s111 = ssub.s32 %s20, %s27
      %s112 = sor.u32 %s110, %s111
      %p113 = scmp.eq.s32.totalorder %s112, 0
      %s115 = sadd.s32 %s114, 1
      %s116 = scalar_select %p113, %s114, %s115
      %p119 = pneg %p113
      %p120 = scmp.eq.s32.totalorder %s12, 7
      %p121 = por %p119, %p120
      %p122 = scmp.ne.s32.totalorder %s114, %s117
      %p123 = scmp.eq.s32.totalorder %s12, 0
      %p124 = por %p122, %p123
      %p125 = scmp.ne.s32.totalorder %s114, %s117
      %p126 = scmp.eq.s32.totalorder %s17, 7
      %p127 = por %p125, %p126
      %p128 = scmp.ne.s32.totalorder %s117, %s118
      %p129 = scmp.eq.s32.totalorder %s17, 0
      %p130 = por %p128, %p129
      %p131 = scmp.ne.s32.totalorder %s117, %s118
      %p132 = scmp.eq.s32.totalorder %s18, 7
      %p133 = por %p131, %p132
      %p135 = scmp.ne.s32.totalorder %s118, %s134
      %p136 = scmp.eq.s32.totalorder %s18, 0
      %p137 = por %p135, %p136
      %p138 = scmp.le.s32.totalorder 1, %s12
      %p139 = scmp.lt.s32.totalorder %s12, 9
      %p140 = pnand %p138, %p139
      %p141 = pneg %p140
      // Predicated region
      $region9: #{tpu_custom_call.1} parent=5 // pred_check
        _
      $region10: #{tpu_custom_call.1} parent=5 // pred_check_branch
        %143 = sbr.rel (%p140) target = $region12
      $region11: #{tpu_custom_call.1} parent=5 // pred_region
        %s144 = ssub.s32 %s12, 1
        // Predicated region
        $region13: #{tpu_custom_call.1} parent=11 // pred_check
          %p145 = pneg %p76
        $region14: #{tpu_custom_call.1} parent=11 // pred_check_branch
          %147 = sbr.rel (%p145) target = $region16
        $region15: #{tpu_custom_call.1} parent=11 // pred_region
          %p148 = scmp.lt.s32.totalorder %s22, 0
          %s149 = scalar_select %p148, %s22, 0
          %s150 = smul.addr %s149, 2
          %s151 = scalar_lea.vmem %s1, %s150
        $region16: #{tpu_custom_call.1} parent=11 // pred_fallthru
          _
        // Predicated region
        $region17: #{tpu_custom_call.1} parent=11 // pred_check
          %p152 = pneg %p102
        $region18: #{tpu_custom_call.1} parent=11 // pred_check_branch
          %154 = sbr.rel (%p152) target = $region20
        $region19: #{tpu_custom_call.1} parent=11 // pred_region
          %p155 = scmp.lt.s32.totalorder %s22, 0
          %s156 = scalar_select %p155, %s22, 0
          %s157 = scalar_lea.vmem %s2, %s156
        $region20: #{tpu_custom_call.1} parent=11 // pred_fallthru
          _
      $region12: #{tpu_custom_call.1} parent=5 // pred_fallthru
        _
      %p158 = scmp.lt.s32.totalorder %s12, 8
      // Predicated region
      $region21: #{tpu_custom_call.1} parent=5 // pred_check
        %p159 = pneg %p158
      $region22: #{tpu_custom_call.1} parent=5 // pred_check_branch
        %161 = sbr.rel (%p159) target = $region24
      $region23: #{tpu_custom_call.1} parent=5 // pred_region
        // Predicated region
        $region25: #{tpu_custom_call.1} parent=23 // pred_check
          %p162 = pneg %p44
        $region26: #{tpu_custom_call.1} parent=23 // pred_check_branch
          %164 = sbr.rel (%p162) target = $region28
        $region27: #{tpu_custom_call.1} parent=23 // pred_region
          %p165 = scmp.lt.s32.totalorder %s19, 7
          %s166 = scalar_select %p165, %s19, 7
          %s167 = smul.addr %s166, 16
          %s168 = smul.addr %s167, 4
          %s169 = scalar_lea.vmem %s0, %s168
        $region28: #{tpu_custom_call.1} parent=23 // pred_fallthru
          _
      $region24: #{tpu_custom_call.1} parent=5 // pred_fallthru
        _
      %p170 = scmp.le.s32.totalorder 1, %s12
      %p171 = scmp.lt.s32.totalorder %s12, 9
      %p172 = pnand %p170, %p171
      %p173 = pneg %p172
      // Predicated region
      $region29: #{tpu_custom_call.1} parent=5 // pred_check
        _
      $region30: #{tpu_custom_call.1} parent=5 // pred_check_branch
        %175 = sbr.rel (%p172) target = $region32
      $region31: #{tpu_custom_call.1} parent=5 // pred_region
        %s176 = ssub.s32 %s12, 1
        %p177 = scmp.lt.s32.totalorder %s21, 7
        %s178 = scalar_select %p177, %s21, 7
        %s179 = smul.addr %s178, 16
        %s180 = smul.addr %s179, 4
        %s181 = scalar_lea.vmem %s0, %s180
        %p182 = pneg %p50
        %p183 = pneg %p47
        %p184 = scmp.lt.s32.totalorder %s22, 0
        %s185 = scalar_select %p184, %s22, 0
        %s186 = smul.addr %s185, 2
        %s187 = scalar_lea.vmem %s1, %s186
        %p188 = pneg %p76
        %p189 = pneg %p73
        %p190 = scmp.lt.s32.totalorder %s22, 0
        %s191 = scalar_select %p190, %s22, 0
        %s192 = scalar_lea.vmem %s2, %s191
        %p193 = pneg %p102
        %p194 = pneg %p99
        %p195 = pneg %p130
        %p196 = pneg %p127
        %s197 = sand.u32 %s117, 1
        %s198 = scalar_lea.sflag [#allocation3], %s197
        %s199 = sand.u32 %s117, 1
        %s200 = smul.addr %s199, 36
        %s201 = scalar_lea.vmem [#allocation2], %s200
        %p202 = scmp.lt.s32.totalorder %s21, 7
        %s203 = scalar_select %p202, %s21, 7
        %s204 = smul.addr %s203, 16
        %s205 = smul.addr %s204, 4
        %s206 = scalar_lea.vmem %s0, %s205
        %p207 = scmp.lt.s32.totalorder %s22, 0
        %s208 = scalar_select %p207, %s22, 0
        %s209 = smul.addr %s208, 2
        %s210 = scalar_lea.vmem %s1, %s209
        %p211 = scmp.lt.s32.totalorder %s22, 0
        %s212 = scalar_select %p211, %s22, 0
        %s213 = scalar_lea.vmem %s2, %s212
        %v215 = vld [vmem:[%s206] sm:$0xf]
        %v216 = vld [vmem:[%s206 + $0x4] sm:$0xf]
        %v217 = vld [vmem:[%s206 + $0x8] sm:$0xf]
        %v218 = vld [vmem:[%s206 + $0xc] sm:$0xf]
        %v219 = vld [vmem:[%s206 + $0x10] sm:$0xf]
        %v220 = vld [vmem:[%s206 + $0x14] sm:$0xf]
        %v221 = vld [vmem:[%s206 + $0x18] sm:$0xf]
        %v222 = vld [vmem:[%s206 + $0x1c] sm:$0xf]
        %v223 = vld [vmem:[%s206 + $0x20] sm:$0xf]
        %v224 = vld [vmem:[%s210] sm:$0x3]
        %v225 = vld [vmem:[%s206 + $0x24] sm:$0x1]
        %s226 = scalar_lea.vmem %s210, 2
        %v227 = vld [vmem:[%s226] sm:$0x3]
        %v238 = vunpack.c.l.b16 %v215
        %v239 = vunpack.c.l.b16 %v216
        %v240 = vunpack.c.l.b16 %v217
        %v241 = vunpack.c.l.b16 %v218
        %v242 = vunpack.c.l.b16 %v219
        %v243 = vunpack.c.l.b16 %v220
        %v244 = vunpack.c.l.b16 %v221
        %v245 = vunpack.c.l.b16 %v222
        %v246 = vunpack.c.l.b16 %v223
        %v247 = vunpack.c.l.b16 %v225
        %v248 = vpack.c.b16 %v239, %v238
        %v249 = vpack.c.b16 %v241, %v240
        %v250 = vpack.c.b16 %v243, %v242
        %v251 = vpack.c.b16 %v245, %v244
        %v252 = vpack.c.b16 %v247, %v246
        %vm253 = vsmask.f32 7424
        %v255 = vshrl.u32 %v248, 16
        %v257 = vshll.u32 %v248, 16
        %v259 = vrot.slane %v257, 1
        %v260 = vor.u32 %v255, %v259
        %v262 = vshll.u32 %v249, 16
        %v264 = vrot.slane %v262, 1
        %v265 = vsel %vm253, %v260, %v264
        %v266 = vshrl.u32 %v249, 16
        %v268 = vor.u32 %v266, %v264
        %v270 = vshll.u32 %v250, 16
        %v272 = vrot.slane %v270, 1
        %v273 = vsel %vm253, %v268, %v272
        %v274 = vshrl.u32 %v250, 16
        %v276 = vor.u32 %v274, %v272
        %v278 = vshll.u32 %v251, 16
        %v280 = vrot.slane %v278, 1
        %v281 = vsel %vm253, %v276, %v280
        %v282 = vshrl.u32 %v251, 16
        %v284 = vor.u32 %v282, %v280
        %v286 = vshll.u32 %v252, 16
        %v288 = vrot.slane %v286, 1
        %v289 = vsel %vm253, %v284, %v288
        %v290 = vshrl.u32 %v252, 16
        %v292 = vor.u32 %v290, %v288
        %vm293 = vcmask 31744
        %v295 = vsel %vm293, %v265, 0
        %v298 = vsel %vm293, %v273, 0
        %v301 = vsel %vm293, %v281, 0
        %v304 = vsel %vm293, %v289, 0
        %v307 = vsel %vm293, %v292, 0
        %vm309 = vcmask 1041408
        %v311 = vsel %vm309, %v227, 0
        %313 = vmatprep.subr.bf16.mxu0 0
        %314 = vmatpush1.bf16.msra.mxu0 %v311
        %315 = vmatprep.subr.bf16.mxu0 0
        %316 = vmatpush1.bf16.msra.mxu0 0
        %317 = vmatprep.subr.bf16.mxu0 0
        %318 = vmatpush1.bf16.msra.mxu0 0
        %319 = vmatprep.subr.bf16.mxu0 0
        %320 = vmatpush1.bf16.msra.mxu0 0
        %321 = vmatprep.subr.bf16.mxu0 0
        %322 = vmatpush1.bf16.msra.mxu0 0
        %323 = vmatprep.subr.bf16.mxu0 0
        %324 = vmatpush1.bf16.msra.mxu0 0
        %325 = vmatprep.subr.bf16.mxu0 0
        %326 = vmatpush1.bf16.msra.mxu0 0
        %327 = vmatprep.subr.bf16.mxu0 0
        %328 = vmatpush1.bf16.msra.mxu0 0
        %329 = vmatprep.subr.bf16.mxu0 0
        %330 = vmatpush1.bf16.msra.mxu0 0
        %331 = vmatprep.subr.bf16.mxu0 0
        %332 = vmatpush1.bf16.msra.mxu0 0
        %333 = vmatprep.subr.bf16.mxu0 0
        %334 = vmatpush1.bf16.msra.mxu0 0
        %335 = vmatprep.subr.bf16.mxu0 0
        %336 = vmatpush1.bf16.msra.mxu0 0
        %337 = vmatprep.subr.bf16.mxu0 0
        %338 = vmatpush1.bf16.msra.mxu0 0
        %339 = vmatprep.subr.bf16.mxu0 0
        %340 = vmatpush1.bf16.msra.mxu0 0
        %341 = vmatprep.subr.bf16.mxu0 0
        %342 = vmatpush1.bf16.msra.mxu0 0
        %343 = vmatprep.subr.bf16.mxu0 0
        %344 = vmatpush1.bf16.msra.mxu0 0
        %345 = vmatprep.mubr.bf16.mxu0 0
        %346 = vmatmul.mubr.bf16.gmra.mrb[0].mxu0 %v295
        %v347 = vpop.f32.mrb[0].mxu0
        %v348 = vadd.f32 0.0, %v347
        %v349 = vpop.f32.mrb[0].mxu0
        %v350 = vpop.f32.mrb[0].mxu0
        %v351 = vadd.f32 0.0, %v350
        %v352 = vpop.f32.mrb[0].mxu0
        %353 = vmatprep.mubr.bf16.mxu0 0
        %354 = vmatmul.mubr.bf16.gmra.mrb[0].mxu0 %v298
        %v355 = vpop.f32.mrb[0].mxu0
        %v356 = vadd.f32 0.0, %v355
        %v357 = vpop.f32.mrb[0].mxu0
        %v358 = vpop.f32.mrb[0].mxu0
        %v359 = vadd.f32 0.0, %v358
        %v360 = vpop.f32.mrb[0].mxu0
        %361 = vmatprep.mubr.bf16.mxu0 0
        %362 = vmatmul.mubr.bf16.gmra.mrb[0].mxu0 %v301
        %v363 = vpop.f32.mrb[0].mxu0
        %v364 = vadd.f32 0.0, %v363
        %v365 = vpop.f32.mrb[0].mxu0
        %v366 = vpop.f32.mrb[0].mxu0
        %v367 = vadd.f32 0.0, %v366
        %v368 = vpop.f32.mrb[0].mxu0
        %369 = vmatprep.mubr.bf16.mxu0 0
        %370 = vmatmul.mubr.bf16.gmra.mrb[0].mxu0 %v304
        %v371 = vpop.f32.mrb[0].mxu0
        %v372 = vadd.f32 0.0, %v371
        %v373 = vpop.f32.mrb[0].mxu0
        %v374 = vpop.f32.mrb[0].mxu0
        %v375 = vadd.f32 0.0, %v374
        %v376 = vpop.f32.mrb[0].mxu0
        %377 = vmatprep.mubr.bf16.mxu0 0
        %378 = vmatmul.mubr.bf16.gmra.mrb[0].mxu0 %v307
        %v379 = vpop.f32.mrb[0].mxu0
        %v380 = vadd.f32 0.0, %v379
        %v381 = vpop.f32.mrb[0].mxu0
        %v382 = vpop.f32.mrb[0].mxu0
        %v383 = vpop.f32.mrb[0].mxu0
        %384 = vdwg.mxu0
        %v385 = vpack.c.b16 %v246, %v246
        %v386 = vsel %vm293, %v248, 0
        %v388 = vsel %vm293, %v249, 0
        %v390 = vsel %vm293, %v250, 0
        %v392 = vsel %vm293, %v251, 0
        %v395 = vsel %vm293, %v385, 0
        %v398 = vsel %vm309, %v224, 0
        %400 = vmatprep.subr.bf16.mxu0 0
        %401 = vmatpush1.bf16.msra.mxu0 %v398
        %402 = vmatprep.subr.bf16.mxu0 0
        %403 = vmatpush1.bf16.msra.mxu0 0
        %404 = vmatprep.subr.bf16.mxu0 0
        %405 = vmatpush1.bf16.msra.mxu0 0
        %406 = vmatprep.subr.bf16.mxu0 0
        %407 = vmatpush1.bf16.msra.mxu0 0
        %408 = vmatprep.subr.bf16.mxu0 0
        %409 = vmatpush1.bf16.msra.mxu0 0
        %410 = vmatprep.subr.bf16.mxu0 0
        %411 = vmatpush1.bf16.msra.mxu0 0
        %412 = vmatprep.subr.bf16.mxu0 0
        %413 = vmatpush1.bf16.msra.mxu0 0
        %414 = vmatprep.subr.bf16.mxu0 0
        %415 = vmatpush1.bf16.msra.mxu0 0
        %416 = vmatprep.subr.bf16.mxu0 0
        %417 = vmatpush1.bf16.msra.mxu0 0
        %418 = vmatprep.subr.bf16.mxu0 0
        %419 = vmatpush1.bf16.msra.mxu0 0
        %420 = vmatprep.subr.bf16.mxu0 0
        %421 = vmatpush1.bf16.msra.mxu0 0
        %422 = vmatprep.subr.bf16.mxu0 0
        %423 = vmatpush1.bf16.msra.mxu0 0
        %424 = vmatprep.subr.bf16.mxu0 0
        %425 = vmatpush1.bf16.msra.mxu0 0
        %426 = vmatprep.subr.bf16.mxu0 0
        %427 = vmatpush1.bf16.msra.mxu0 0
        %428 = vmatprep.subr.bf16.mxu0 0
        %429 = vmatpush1.bf16.msra.mxu0 0
        %430 = vmatprep.subr.bf16.mxu0 0
        %431 = vmatpush1.bf16.msra.mxu0 0
        %432 = vmatprep.mubr.bf16.mxu0 0
        %433 = vmatmul.mubr.bf16.gmra.mrb[0].mxu0 %v386
        %v434 = vpop.f32.mrb[0].mxu0
        %v435 = vadd.f32 %v348, %v434
        %v436 = vpop.f32.mrb[0].mxu0
        %v437 = vpop.f32.mrb[0].mxu0
        %v438 = vadd.f32 %v351, %v437
        %v439 = vpop.f32.mrb[0].mxu0
        %440 = vmatprep.mubr.bf16.mxu0 0
        %441 = vmatmul.mubr.bf16.gmra.mrb[0].mxu0 %v388
        %v442 = vpop.f32.mrb[0].mxu0
        %v443 = vadd.f32 %v356, %v442
        %v444 = vpop.f32.mrb[0].mxu0
        %v445 = vpop.f32.mrb[0].mxu0
        %v446 = vadd.f32 %v359, %v445
        %v447 = vpop.f32.mrb[0].mxu0
        %448 = vmatprep.mubr.bf16.mxu0 0
        %449 = vmatmul.mubr.bf16.gmra.mrb[0].mxu0 %v390
        %v450 = vpop.f32.mrb[0].mxu0
        %v451 = vadd.f32 %v364, %v450
        %v452 = vpop.f32.mrb[0].mxu0
        %v453 = vpop.f32.mrb[0].mxu0
        %v454 = vadd.f32 %v367, %v453
        %v455 = vpop.f32.mrb[0].mxu0
        %456 = vmatprep.mubr.bf16.mxu0 0
        %457 = vmatmul.mubr.bf16.gmra.mrb[0].mxu0 %v392
        %v458 = vpop.f32.mrb[0].mxu0
        %v459 = vadd.f32 %v372, %v458
        %v460 = vpop.f32.mrb[0].mxu0
        %v461 = vpop.f32.mrb[0].mxu0
        %v462 = vadd.f32 %v375, %v461
        %v463 = vpop.f32.mrb[0].mxu0
        %464 = vmatprep.mubr.bf16.mxu0 0
        %465 = vmatmul.mubr.bf16.gmra.mrb[0].mxu0 %v395
        %v466 = vpop.f32.mrb[0].mxu0
        %v467 = vadd.f32 %v380, %v466
        %v468 = vpop.f32.mrb[0].mxu0
        %v469 = vpop.f32.mrb[0].mxu0
        %v470 = vpop.f32.mrb[0].mxu0
        %471 = vdwg.mxu0
        %v472 = vld [vmem:[%s206] sm:$0xe]
        %s473 = scalar_lea.vmem %s210, 4
        %v474 = vld [vmem:[%s473] sm:$0x3]
        %v476 = vunpack.c.l.b16 %v472
        %v477 = vpack.c.b16 %v239, %v476
        %vm478 = vcmask 1046528
        %v479 = vrot.slane %v477, 1
        %v480 = vrot.slane %v249, 1
        %v481 = vsel %vm478, %v479, %v480
        %v482 = vrot.slane %v250, 1
        %v483 = vsel %vm478, %v480, %v482
        %v484 = vrot.slane %v251, 1
        %v485 = vsel %vm478, %v482, %v484
        %v486 = vrot.slane %v252, 1
        %v487 = vsel %vm478, %v484, %v486
        %v489 = vsel %vm293, %v481, 0
        %v492 = vsel %vm293, %v483, 0
        %v495 = vsel %vm293, %v485, 0
        %v498 = vsel %vm293, %v487, 0
        %v501 = vsel %vm293, %v486, 0
        %v504 = vsel %vm309, %v474, 0
        %506 = vmatprep.subr.bf16.mxu0 0
        %507 = vmatpush1.bf16.msra.mxu0 %v504
        %508 = vmatprep.subr.bf16.mxu0 0
        %509 = vmatpush1.bf16.msra.mxu0 0
        %510 = vmatprep.subr.bf16.mxu0 0
        %511 = vmatpush1.bf16.msra.mxu0 0
        %512 = vmatprep.subr.bf16.mxu0 0
        %513 = vmatpush1.bf16.msra.mxu0 0
        %514 = vmatprep.subr.bf16.mxu0 0
        %515 = vmatpush1.bf16.msra.mxu0 0
        %516 = vmatprep.subr.bf16.mxu0 0
        %517 = vmatpush1.bf16.msra.mxu0 0
        %518 = vmatprep.subr.bf16.mxu0 0
        %519 = vmatpush1.bf16.msra.mxu0 0
        %520 = vmatprep.subr.bf16.mxu0 0
        %521 = vmatpush1.bf16.msra.mxu0 0
        %522 = vmatprep.subr.bf16.mxu0 0
        %523 = vmatpush1.bf16.msra.mxu0 0
        %524 = vmatprep.subr.bf16.mxu0 0
        %525 = vmatpush1.bf16.msra.mxu0 0
        %526 = vmatprep.subr.bf16.mxu0 0
        %527 = vmatpush1.bf16.msra.mxu0 0
        %528 = vmatprep.subr.bf16.mxu0 0
        %529 = vmatpush1.bf16.msra.mxu0 0
        %530 = vmatprep.subr.bf16.mxu0 0
        %531 = vmatpush1.bf16.msra.mxu0 0
        %532 = vmatprep.subr.bf16.mxu0 0
        %533 = vmatpush1.bf16.msra.mxu0 0
        %534 = vmatprep.subr.bf16.mxu0 0
        %535 = vmatpush1.bf16.msra.mxu0 0
        %536 = vmatprep.subr.bf16.mxu0 0
        %537 = vmatpush1.bf16.msra.mxu0 0
        %538 = vmatprep.mubr.bf16.mxu0 0
        %539 = vmatmul.mubr.bf16.gmra.mrb[0].mxu0 %v489
        %v540 = vpop.f32.mrb[0].mxu0
        %v541 = vadd.f32 0.0, %v540
        %v542 = vpop.f32.mrb[0].mxu0
        %v543 = vpop.f32.mrb[0].mxu0
        %v544 = vadd.f32 0.0, %v543
        %v545 = vpop.f32.mrb[0].mxu0
        %546 = vmatprep.mubr.bf16.mxu0 0
        %547 = vmatmul.mubr.bf16.gmra.mrb[0].mxu0 %v492
        %v548 = vpop.f32.mrb[0].mxu0
        %v549 = vadd.f32 0.0, %v548
        %v550 = vpop.f32.mrb[0].mxu0
        %v551 = vpop.f32.mrb[0].mxu0
        %v552 = vadd.f32 0.0, %v551
        %v553 = vpop.f32.mrb[0].mxu0
        %554 = vmatprep.mubr.bf16.mxu0 0
        %555 = vmatmul.mubr.bf16.gmra.mrb[0].mxu0 %v495
        %v556 = vpop.f32.mrb[0].mxu0
        %v557 = vadd.f32 0.0, %v556
        %v558 = vpop.f32.mrb[0].mxu0
        %v559 = vpop.f32.mrb[0].mxu0
        %v560 = vadd.f32 0.0, %v559
        %v561 = vpop.f32.mrb[0].mxu0
        %562 = vmatprep.mubr.bf16.mxu0 0
        %563 = vmatmul.mubr.bf16.gmra.mrb[0].mxu0 %v498
        %v564 = vpop.f32.mrb[0].mxu0
        %v565 = vadd.f32 0.0, %v564
        %v566 = vpop.f32.mrb[0].mxu0
        %v567 = vpop.f32.mrb[0].mxu0
        %v568 = vadd.f32 0.0, %v567
        %v569 = vpop.f32.mrb[0].mxu0
        %570 = vmatprep.mubr.bf16.mxu0 0
        %571 = vmatmul.mubr.bf16.gmra.mrb[0].mxu0 %v501
        %v572 = vpop.f32.mrb[0].mxu0
        %v573 = vadd.f32 0.0, %v572
        %v574 = vpop.f32.mrb[0].mxu0
        %v575 = vpop.f32.mrb[0].mxu0
        %v576 = vpop.f32.mrb[0].mxu0
        %577 = vdwg.mxu0
        %v578 = vadd.f32 %v435, %v541
        %v579 = vadd.f32 %v438, %v544
        %v580 = vadd.f32 %v443, %v549
        %v581 = vadd.f32 %v446, %v552
        %v582 = vadd.f32 %v451, %v557
        %v583 = vadd.f32 %v454, %v560
        %v584 = vadd.f32 %v459, %v565
        %v585 = vadd.f32 %v462, %v568
        %v586 = vadd.f32 %v467, %v573
        %v587 = vld [vmem:[%s206 + $0x8] sm:$0xe]
        %v588 = vld [vmem:[%s206 + $0xc] sm:$0xf]
        %v589 = vld [vmem:[%s206 + $0x10] sm:$0xf]
        %v590 = vld [vmem:[%s206 + $0x14] sm:$0xf]
        %v591 = vld [vmem:[%s206 + $0x18] sm:$0xf]
        %v592 = vld [vmem:[%s206 + $0x1c] sm:$0xf]
        %v593 = vld [vmem:[%s206 + $0x20] sm:$0xf]
        %v594 = vld [vmem:[%s206 + $0x24] sm:$0xf]
        %v595 = vld [vmem:[%s206 + $0x28] sm:$0xf]
        %v596 = vld [vmem:[%s206 + $0x2c] sm:$0x1]
        %s597 = scalar_lea.vmem %s210, 6
        %v598 = vld [vmem:[%s597] sm:$0x3]
        %v609 = vunpack.c.l.b16 %v587
        %v610 = vunpack.c.l.b16 %v588
        %v611 = vunpack.c.l.b16 %v589
        %v612 = vunpack.c.l.b16 %v590
        %v613 = vunpack.c.l.b16 %v591
        %v614 = vunpack.c.l.b16 %v592
        %v615 = vunpack.c.l.b16 %v593
        %v616 = vunpack.c.l.b16 %v594
        %v617 = vunpack.c.l.b16 %v595
        %v618 = vunpack.c.l.b16 %v596
        %v619 = vpack.c.b16 %v610, %v609
        %v620 = vpack.c.b16 %v612, %v611
        %v621 = vpack.c.b16 %v614, %v613
        %v622 = vpack.c.b16 %v616, %v615
        %v623 = vpack.c.b16 %v618, %v617
        %v624 = vrot.slane %v619, 1
        %v625 = vrot.slane %v620, 1
        %v626 = vsel %vm478, %v624, %v625
        %v627 = vrot.slane %v621, 1
        %v628 = vsel %vm478, %v625, %v627
        %v629 = vrot.slane %v622, 1
        %v630 = vsel %vm478, %v627, %v629
        %v631 = vrot.slane %v623, 1
        %v632 = vsel %vm478, %v629, %v631
        %v634 = vsel %vm293, %v626, 0
        %v637 = vsel %vm293, %v628, 0
        %v640 = vsel %vm293, %v630, 0
        %v643 = vsel %vm293, %v632, 0
        %v646 = vsel %vm293, %v631, 0
        %v649 = vsel %vm309, %v598, 0
        %651 = vmatprep.subr.bf16.mxu0 0
        %652 = vmatpush1.bf16.msra.mxu0 %v649
        %653 = vmatprep.subr.bf16.mxu0 0
        %654 = vmatpush1.bf16.msra.mxu0 0
        %655 = vmatprep.subr.bf16.mxu0 0
        %656 = vmatpush1.bf16.msra.mxu0 0
        %657 = vmatprep.subr.bf16.mxu0 0
        %658 = vmatpush1.bf16.msra.mxu0 0
        %659 = vmatprep.subr.bf16.mxu0 0
        %660 = vmatpush1.bf16.msra.mxu0 0
        %661 = vmatprep.subr.bf16.mxu0 0
        %662 = vmatpush1.bf16.msra.mxu0 0
        %663 = vmatprep.subr.bf16.mxu0 0
        %664 = vmatpush1.bf16.msra.mxu0 0
        %665 = vmatprep.subr.bf16.mxu0 0
        %666 = vmatpush1.bf16.msra.mxu0 0
        %667 = vmatprep.subr.bf16.mxu0 0
        %668 = vmatpush1.bf16.msra.mxu0 0
        %669 = vmatprep.subr.bf16.mxu0 0
        %670 = vmatpush1.bf16.msra.mxu0 0
        %671 = vmatprep.subr.bf16.mxu0 0
        %672 = vmatpush1.bf16.msra.mxu0 0
        %673 = vmatprep.subr.bf16.mxu0 0
        %674 = vmatpush1.bf16.msra.mxu0 0
        %675 = vmatprep.subr.bf16.mxu0 0
        %676 = vmatpush1.bf16.msra.mxu0 0
        %677 = vmatprep.subr.bf16.mxu0 0
        %678 = vmatpush1.bf16.msra.mxu0 0
        %679 = vmatprep.subr.bf16.mxu0 0
        %680 = vmatpush1.bf16.msra.mxu0 0
        %681 = vmatprep.subr.bf16.mxu0 0
        %682 = vmatpush1.bf16.msra.mxu0 0
        %683 = vmatprep.mubr.bf16.mxu0 0
        %684 = vmatmul.mubr.bf16.gmra.mrb[0].mxu0 %v634
        %v685 = vpop.f32.mrb[0].mxu0
        %v686 = vadd.f32 0.0, %v685
        %v687 = vpop.f32.mrb[0].mxu0
        %v688 = vpop.f32.mrb[0].mxu0
        %v689 = vadd.f32 0.0, %v688
        %v690 = vpop.f32.mrb[0].mxu0
        %691 = vmatprep.mubr.bf16.mxu0 0
        %692 = vmatmul.mubr.bf16.gmra.mrb[0].mxu0 %v637
        %v693 = vpop.f32.mrb[0].mxu0
        %v694 = vadd.f32 0.0, %v693
        %v695 = vpop.f32.mrb[0].mxu0
        %v696 = vpop.f32.mrb[0].mxu0
        %v697 = vadd.f32 0.0, %v696
        %v698 = vpop.f32.mrb[0].mxu0
        %699 = vmatprep.mubr.bf16.mxu0 0
        %700 = vmatmul.mubr.bf16.gmra.mrb[0].mxu0 %v640
        %v701 = vpop.f32.mrb[0].mxu0
        %v702 = vadd.f32 0.0, %v701
        %v703 = vpop.f32.mrb[0].mxu0
        %v704 = vpop.f32.mrb[0].mxu0
        %v705 = vadd.f32 0.0, %v704
        %v706 = vpop.f32.mrb[0].mxu0
        %707 = vmatprep.mubr.bf16.mxu0 0
        %708 = vmatmul.mubr.bf16.gmra.mrb[0].mxu0 %v643
        %v709 = vpop.f32.mrb[0].mxu0
        %v710 = vadd.f32 0.0, %v709
        %v711 = vpop.f32.mrb[0].mxu0
        %v712 = vpop.f32.mrb[0].mxu0
        %v713 = vadd.f32 0.0, %v712
        %v714 = vpop.f32.mrb[0].mxu0
        %715 = vmatprep.mubr.bf16.mxu0 0
        %716 = vmatmul.mubr.bf16.gmra.mrb[0].mxu0 %v646
        %v717 = vpop.f32.mrb[0].mxu0
        %v718 = vadd.f32 0.0, %v717
        %v719 = vpop.f32.mrb[0].mxu0
        %v720 = vpop.f32.mrb[0].mxu0
        %v721 = vpop.f32.mrb[0].mxu0
        %722 = vdwg.mxu0
        %v723 = vadd.f32 %v578, %v686
        %v724 = vadd.f32 %v579, %v689
        %v725 = vadd.f32 %v580, %v694
        %v726 = vadd.f32 %v581, %v697
        %v727 = vadd.f32 %v582, %v702
        %v728 = vadd.f32 %v583, %v705
        %v729 = vadd.f32 %v584, %v710
        %v730 = vadd.f32 %v585, %v713
        %v731 = vadd.f32 %v586, %v718
        %v732 = vld [vmem:[%s206 + $0x2c] sm:$0x3]
        %s733 = scalar_lea.vmem %s210, 8
        %v734 = vld [vmem:[%s733] sm:$0x3]
        %v736 = vunpack.c.l.b16 %v732
        %v737 = vpack.c.b16 %v736, %v617
        %vm738 = vsmask.f32 6400
        %v740 = vshrl.u32 %v619, 16
        %v742 = vrot.slane %v740, 1
        %v743 = vshll.u32 %v619, 16
        %v745 = vrot.slane %v743, 2
        %v746 = vor.u32 %v742, %v745
        %v748 = vshrl.u32 %v620, 16
        %v750 = vrot.slane %v748, 1
        %v751 = vshll.u32 %v620, 16
        %v753 = vrot.slane %v751, 2
        %v754 = vor.u32 %v750, %v753
        %v755 = vsel %vm738, %v746, %v754
        %v757 = vshrl.u32 %v621, 16
        %v759 = vrot.slane %v757, 1
        %v760 = vshll.u32 %v621, 16
        %v762 = vrot.slane %v760, 2
        %v763 = vor.u32 %v759, %v762
        %v764 = vsel %vm738, %v754, %v763
        %v766 = vshrl.u32 %v622, 16
        %v768 = vrot.slane %v766, 1
        %v769 = vshll.u32 %v622, 16
        %v771 = vrot.slane %v769, 2
        %v772 = vor.u32 %v768, %v771
        %v773 = vsel %vm738, %v763, %v772
        %v775 = vshrl.u32 %v737, 16
        %v777 = vrot.slane %v775, 1
        %v778 = vshll.u32 %v737, 16
        %v780 = vrot.slane %v778, 2
        %v781 = vor.u32 %v777, %v780
        %v782 = vsel %vm738, %v772, %v781
        %v784 = vsel %vm293, %v755, 0
        %v787 = vsel %vm293, %v764, 0
        %v790 = vsel %vm293, %v773, 0
        %v793 = vsel %vm293, %v782, 0
        %v796 = vsel %vm293, %v781, 0
        %v799 = vsel %vm309, %v734, 0
        %801 = vmatprep.subr.bf16.mxu0 0
        %802 = vmatpush1.bf16.msra.mxu0 %v799
        %803 = vmatprep.subr.bf16.mxu0 0
        %804 = vmatpush1.bf16.msra.mxu0 0
        %805 = vmatprep.subr.bf16.mxu0 0
        %806 = vmatpush1.bf16.msra.mxu0 0
        %807 = vmatprep.subr.bf16.mxu0 0
        %808 = vmatpush1.bf16.msra.mxu0 0
        %809 = vmatprep.subr.bf16.mxu0 0
        %810 = vmatpush1.bf16.msra.mxu0 0
        %811 = vmatprep.subr.bf16.mxu0 0
        %812 = vmatpush1.bf16.msra.mxu0 0
        %813 = vmatprep.subr.bf16.mxu0 0
        %814 = vmatpush1.bf16.msra.mxu0 0
        %815 = vmatprep.subr.bf16.mxu0 0
        %816 = vmatpush1.bf16.msra.mxu0 0
        %817 = vmatprep.subr.bf16.mxu0 0
        %818 = vmatpush1.bf16.msra.mxu0 0
        %819 = vmatprep.subr.bf16.mxu0 0
        %820 = vmatpush1.bf16.msra.mxu0 0
        %821 = vmatprep.subr.bf16.mxu0 0
        %822 = vmatpush1.bf16.msra.mxu0 0
        %823 = vmatprep.subr.bf16.mxu0 0
        %824 = vmatpush1.bf16.msra.mxu0 0
        %825 = vmatprep.subr.bf16.mxu0 0
        %826 = vmatpush1.bf16.msra.mxu0 0
        %827 = vmatprep.subr.bf16.mxu0 0
        %828 = vmatpush1.bf16.msra.mxu0 0
        %829 = vmatprep.subr.bf16.mxu0 0
        %830 = vmatpush1.bf16.msra.mxu0 0
        %831 = vmatprep.subr.bf16.mxu0 0
        %832 = vmatpush1.bf16.msra.mxu0 0
        %833 = vmatprep.mubr.bf16.mxu0 0
        %834 = vmatmul.mubr.bf16.gmra.mrb[0].mxu0 %v784
        %v835 = vpop.f32.mrb[0].mxu0
        %v836 = vadd.f32 0.0, %v835
        %v837 = vpop.f32.mrb[0].mxu0
        %v838 = vpop.f32.mrb[0].mxu0
        %v839 = vadd.f32 0.0, %v838
        %v840 = vpop.f32.mrb[0].mxu0
        %841 = vmatprep.mubr.bf16.mxu0 0
        %842 = vmatmul.mubr.bf16.gmra.mrb[0].mxu0 %v787
        %v843 = vpop.f32.mrb[0].mxu0
        %v844 = vadd.f32 0.0, %v843
        %v845 = vpop.f32.mrb[0].mxu0
        %v846 = vpop.f32.mrb[0].mxu0
        %v847 = vadd.f32 0.0, %v846
        %v848 = vpop.f32.mrb[0].mxu0
        %849 = vmatprep.mubr.bf16.mxu0 0
        %850 = vmatmul.mubr.bf16.gmra.mrb[0].mxu0 %v790
        %v851 = vpop.f32.mrb[0].mxu0
        %v852 = vadd.f32 0.0, %v851
        %v853 = vpop.f32.mrb[0].mxu0
        %v854 = vpop.f32.mrb[0].mxu0
        %v855 = vadd.f32 0.0, %v854
        %v856 = vpop.f32.mrb[0].mxu0
        %857 = vmatprep.mubr.bf16.mxu0 0
        %858 = vmatmul.mubr.bf16.gmra.mrb[0].mxu0 %v793
        %v859 = vpop.f32.mrb[0].mxu0
        %v860 = vadd.f32 0.0, %v859
        %v861 = vpop.f32.mrb[0].mxu0
        %v862 = vpop.f32.mrb[0].mxu0
        %v863 = vadd.f32 0.0, %v862
        %v864 = vpop.f32.mrb[0].mxu0
        %865 = vmatprep.mubr.bf16.mxu0 0
        %866 = vmatmul.mubr.bf16.gmra.mrb[0].mxu0 %v796
        %v867 = vpop.f32.mrb[0].mxu0
        %v868 = vadd.f32 0.0, %v867
        %v869 = vpop.f32.mrb[0].mxu0
        %v870 = vpop.f32.mrb[0].mxu0
        %v871 = vpop.f32.mrb[0].mxu0
        %872 = vdwg.mxu0
        %v873 = vadd.f32 %v723, %v836
        %v874 = vadd.f32 %v724, %v839
        %v875 = vadd.f32 %v725, %v844
        %v876 = vadd.f32 %v726, %v847
        %v877 = vadd.f32 %v727, %v852
        %v878 = vadd.f32 %v728, %v855
        %v879 = vadd.f32 %v729, %v860
        %v880 = vadd.f32 %v730, %v863
        %v881 = vadd.f32 %v731, %v868
        %v882 = vld [vmem:[%s206 + $0x8] sm:$0xc]
        %s883 = scalar_lea.vmem %s210, 10
        %v884 = vld [vmem:[%s883] sm:$0x3]
        %v886 = vunpack.c.l.b16 %v882
        %v887 = vpack.c.b16 %v610, %v886
        %vm888 = vcmask 1045504
        %v889 = vrot.slane %v887, 2
        %v890 = vrot.slane %v620, 2
        %v891 = vsel %vm888, %v889, %v890
        %v892 = vrot.slane %v621, 2
        %v893 = vsel %vm888, %v890, %v892
        %v894 = vrot.slane %v622, 2
        %v895 = vsel %vm888, %v892, %v894
        %v896 = vrot.slane %v737, 2
        %v897 = vsel %vm888, %v894, %v896
        %v899 = vsel %vm293, %v891, 0
        %v902 = vsel %vm293, %v893, 0
        %v905 = vsel %vm293, %v895, 0
        %v908 = vsel %vm293, %v897, 0
        %v911 = vsel %vm293, %v896, 0
        %v914 = vsel %vm309, %v884, 0
        %916 = vmatprep.subr.bf16.mxu0 0
        %917 = vmatpush1.bf16.msra.mxu0 %v914
        %918 = vmatprep.subr.bf16.mxu0 0
        %919 = vmatpush1.bf16.msra.mxu0 0
        %920 = vmatprep.subr.bf16.mxu0 0
        %921 = vmatpush1.bf16.msra.mxu0 0
        %922 = vmatprep.subr.bf16.mxu0 0
        %923 = vmatpush1.bf16.msra.mxu0 0
        %924 = vmatprep.subr.bf16.mxu0 0
        %925 = vmatpush1.bf16.msra.mxu0 0
        %926 = vmatprep.subr.bf16.mxu0 0
        %927 = vmatpush1.bf16.msra.mxu0 0
        %928 = vmatprep.subr.bf16.mxu0 0
        %929 = vmatpush1.bf16.msra.mxu0 0
        %930 = vmatprep.subr.bf16.mxu0 0
        %931 = vmatpush1.bf16.msra.mxu0 0
        %932 = vmatprep.subr.bf16.mxu0 0
        %933 = vmatpush1.bf16.msra.mxu0 0
        %934 = vmatprep.subr.bf16.mxu0 0
        %935 = vmatpush1.bf16.msra.mxu0 0
        %936 = vmatprep.subr.bf16.mxu0 0
        %937 = vmatpush1.bf16.msra.mxu0 0
        %938 = vmatprep.subr.bf16.mxu0 0
        %939 = vmatpush1.bf16.msra.mxu0 0
        %940 = vmatprep.subr.bf16.mxu0 0
        %941 = vmatpush1.bf16.msra.mxu0 0
        %942 = vmatprep.subr.bf16.mxu0 0
        %943 = vmatpush1.bf16.msra.mxu0 0
        %944 = vmatprep.subr.bf16.mxu0 0
        %945 = vmatpush1.bf16.msra.mxu0 0
        %946 = vmatprep.subr.bf16.mxu0 0
        %947 = vmatpush1.bf16.msra.mxu0 0
        %948 = vmatprep.mubr.bf16.mxu0 0
        %949 = vmatmul.mubr.bf16.gmra.mrb[0].mxu0 %v899
        %v950 = vpop.f32.mrb[0].mxu0
        %v951 = vadd.f32 0.0, %v950
        %v952 = vpop.f32.mrb[0].mxu0
        %v953 = vpop.f32.mrb[0].mxu0
        %v954 = vadd.f32 0.0, %v953
        %v955 = vpop.f32.mrb[0].mxu0
        %956 = vmatprep.mubr.bf16.mxu0 0
        %957 = vmatmul.mubr.bf16.gmra.mrb[0].mxu0 %v902
        %v958 = vpop.f32.mrb[0].mxu0
        %v959 = vadd.f32 0.0, %v958
        %v960 = vpop.f32.mrb[0].mxu0
        %v961 = vpop.f32.mrb[0].mxu0
        %v962 = vadd.f32 0.0, %v961
        %v963 = vpop.f32.mrb[0].mxu0
        %964 = vmatprep.mubr.bf16.mxu0 0
        %965 = vmatmul.mubr.bf16.gmra.mrb[0].mxu0 %v905
        %v966 = vpop.f32.mrb[0].mxu0
        %v967 = vadd.f32 0.0, %v966
        %v968 = vpop.f32.mrb[0].mxu0
        %v969 = vpop.f32.mrb[0].mxu0
        %v970 = vadd.f32 0.0, %v969
        %v971 = vpop.f32.mrb[0].mxu0
        %972 = vmatprep.mubr.bf16.mxu0 0
        %973 = vmatmul.mubr.bf16.gmra.mrb[0].mxu0 %v908
        %v974 = vpop.f32.mrb[0].mxu0
        %v975 = vadd.f32 0.0, %v974
        %v976 = vpop.f32.mrb[0].mxu0
        %v977 = vpop.f32.mrb[0].mxu0
        %v978 = vadd.f32 0.0, %v977
        %v979 = vpop.f32.mrb[0].mxu0
        %980 = vmatprep.mubr.bf16.mxu0 0
        %981 = vmatmul.mubr.bf16.gmra.mrb[0].mxu0 %v911
        %v982 = vpop.f32.mrb[0].mxu0
        %v983 = vadd.f32 0.0, %v982
        %v984 = vpop.f32.mrb[0].mxu0
        %v985 = vpop.f32.mrb[0].mxu0
        %v986 = vpop.f32.mrb[0].mxu0
        %987 = vdwg.mxu0
        %v988 = vadd.f32 %v873, %v951
        %v989 = vadd.f32 %v874, %v954
        %v990 = vadd.f32 %v875, %v959
        %v991 = vadd.f32 %v876, %v962
        %v992 = vadd.f32 %v877, %v967
        %v993 = vadd.f32 %v878, %v970
        %v994 = vadd.f32 %v879, %v975
        %v995 = vadd.f32 %v880, %v978
        %v996 = vadd.f32 %v881, %v983
        %v997 = vld [vmem:[%s206 + $0x10] sm:$0xc]
        %v998 = vld [vmem:[%s206 + $0x14] sm:$0xf]
        %v999 = vld [vmem:[%s206 + $0x18] sm:$0xf]
        %v1000 = vld [vmem:[%s206 + $0x1c] sm:$0xf]
        %v1001 = vld [vmem:[%s206 + $0x20] sm:$0xf]
        %v1002 = vld [vmem:[%s206 + $0x24] sm:$0xf]
        %v1003 = vld [vmem:[%s206 + $0x28] sm:$0xf]
        %v1004 = vld [vmem:[%s206 + $0x2c] sm:$0xf]
        %v1005 = vld [vmem:[%s206 + $0x30] sm:$0xf]
        %v1006 = vld [vmem:[%s206 + $0x34] sm:$0x3]
        %s1007 = scalar_lea.vmem %s210, 12
        %v1008 = vld [vmem:[%s1007] sm:$0x3]
        %v1019 = vunpack.c.l.b16 %v997
        %v1020 = vunpack.c.l.b16 %v998
        %v1021 = vunpack.c.l.b16 %v999
        %v1022 = vunpack.c.l.b16 %v1000
        %v1023 = vunpack.c.l.b16 %v1001
        %v1024 = vunpack.c.l.b16 %v1002
        %v1025 = vunpack.c.l.b16 %v1003
        %v1026 = vunpack.c.l.b16 %v1004
        %v1027 = vunpack.c.l.b16 %v1005
        %v1028 = vunpack.c.l.b16 %v1006
        %v1029 = vpack.c.b16 %v1020, %v1019
        %v1030 = vpack.c.b16 %v1022, %v1021
        %v1031 = vpack.c.b16 %v1024, %v1023
        %v1032 = vpack.c.b16 %v1026, %v1025
        %v1033 = vpack.c.b16 %v1028, %v1027
        %v1034 = vrot.slane %v1029, 2
        %v1035 = vrot.slane %v1030, 2
        %v1036 = vsel %vm888, %v1034, %v1035
        %v1037 = vrot.slane %v1031, 2
        %v1038 = vsel %vm888, %v1035, %v1037
        %v1039 = vrot.slane %v1032, 2
        %v1040 = vsel %vm888, %v1037, %v1039
        %v1041 = vrot.slane %v1033, 2
        %v1042 = vsel %vm888, %v1039, %v1041
        %v1044 = vsel %vm293, %v1036, 0
        %v1047 = vsel %vm293, %v1038, 0
        %v1050 = vsel %vm293, %v1040, 0
        %v1053 = vsel %vm293, %v1042, 0
        %v1056 = vsel %vm293, %v1041, 0
        %v1059 = vsel %vm309, %v1008, 0
        %1061 = vmatprep.subr.bf16.mxu0 0
        %1062 = vmatpush1.bf16.msra.mxu0 %v1059
        %1063 = vmatprep.subr.bf16.mxu0 0
        %1064 = vmatpush1.bf16.msra.mxu0 0
        %1065 = vmatprep.subr.bf16.mxu0 0
        %1066 = vmatpush1.bf16.msra.mxu0 0
        %1067 = vmatprep.subr.bf16.mxu0 0
        %1068 = vmatpush1.bf16.msra.mxu0 0
        %1069 = vmatprep.subr.bf16.mxu0 0
        %1070 = vmatpush1.bf16.msra.mxu0 0
        %1071 = vmatprep.subr.bf16.mxu0 0
        %1072 = vmatpush1.bf16.msra.mxu0 0
        %1073 = vmatprep.subr.bf16.mxu0 0
        %1074 = vmatpush1.bf16.msra.mxu0 0
        %1075 = vmatprep.subr.bf16.mxu0 0
        %1076 = vmatpush1.bf16.msra.mxu0 0
        %1077 = vmatprep.subr.bf16.mxu0 0
        %1078 = vmatpush1.bf16.msra.mxu0 0
        %1079 = vmatprep.subr.bf16.mxu0 0
        %1080 = vmatpush1.bf16.msra.mxu0 0
        %1081 = vmatprep.subr.bf16.mxu0 0
        %1082 = vmatpush1.bf16.msra.mxu0 0
        %1083 = vmatprep.subr.bf16.mxu0 0
        %1084 = vmatpush1.bf16.msra.mxu0 0
        %1085 = vmatprep.subr.bf16.mxu0 0
        %1086 = vmatpush1.bf16.msra.mxu0 0
        %1087 = vmatprep.subr.bf16.mxu0 0
        %1088 = vmatpush1.bf16.msra.mxu0 0
        %1089 = vmatprep.subr.bf16.mxu0 0
        %1090 = vmatpush1.bf16.msra.mxu0 0
        %1091 = vmatprep.subr.bf16.mxu0 0
        %1092 = vmatpush1.bf16.msra.mxu0 0
        %1093 = vmatprep.mubr.bf16.mxu0 0
        %1094 = vmatmul.mubr.bf16.gmra.mrb[0].mxu0 %v1044
        %v1095 = vpop.f32.mrb[0].mxu0
        %v1096 = vadd.f32 0.0, %v1095
        %v1097 = vpop.f32.mrb[0].mxu0
        %v1098 = vpop.f32.mrb[0].mxu0
        %v1099 = vadd.f32 0.0, %v1098
        %v1100 = vpop.f32.mrb[0].mxu0
        %1101 = vmatprep.mubr.bf16.mxu0 0
        %1102 = vmatmul.mubr.bf16.gmra.mrb[0].mxu0 %v1047
        %v1103 = vpop.f32.mrb[0].mxu0
        %v1104 = vadd.f32 0.0, %v1103
        %v1105 = vpop.f32.mrb[0].mxu0
        %v1106 = vpop.f32.mrb[0].mxu0
        %v1107 = vadd.f32 0.0, %v1106
        %v1108 = vpop.f32.mrb[0].mxu0
        %1109 = vmatprep.mubr.bf16.mxu0 0
        %1110 = vmatmul.mubr.bf16.gmra.mrb[0].mxu0 %v1050
        %v1111 = vpop.f32.mrb[0].mxu0
        %v1112 = vadd.f32 0.0, %v1111
        %v1113 = vpop.f32.mrb[0].mxu0
        %v1114 = vpop.f32.mrb[0].mxu0
        %v1115 = vadd.f32 0.0, %v1114
        %v1116 = vpop.f32.mrb[0].mxu0
        %1117 = vmatprep.mubr.bf16.mxu0 0
        %1118 = vmatmul.mubr.bf16.gmra.mrb[0].mxu0 %v1053
        %v1119 = vpop.f32.mrb[0].mxu0
        %v1120 = vadd.f32 0.0, %v1119
        %v1121 = vpop.f32.mrb[0].mxu0
        %v1122 = vpop.f32.mrb[0].mxu0
        %v1123 = vadd.f32 0.0, %v1122
        %v1124 = vpop.f32.mrb[0].mxu0
        %1125 = vmatprep.mubr.bf16.mxu0 0
        %1126 = vmatmul.mubr.bf16.gmra.mrb[0].mxu0 %v1056
        %v1127 = vpop.f32.mrb[0].mxu0
        %v1128 = vadd.f32 0.0, %v1127
        %v1129 = vpop.f32.mrb[0].mxu0
        %v1130 = vpop.f32.mrb[0].mxu0
        %v1131 = vpop.f32.mrb[0].mxu0
        %1132 = vdwg.mxu0
        %v1133 = vadd.f32 %v988, %v1096
        %v1134 = vadd.f32 %v989, %v1099
        %v1135 = vadd.f32 %v990, %v1104
        %v1136 = vadd.f32 %v991, %v1107
        %v1137 = vadd.f32 %v992, %v1112
        %v1138 = vadd.f32 %v993, %v1115
        %v1139 = vadd.f32 %v994, %v1120
        %v1140 = vadd.f32 %v995, %v1123
        %v1141 = vadd.f32 %v996, %v1128
        %v1142 = vld [vmem:[%s206 + $0x34] sm:$0x7]
        %s1143 = scalar_lea.vmem %s210, 14
        %v1144 = vld [vmem:[%s1143] sm:$0x3]
        %v1146 = vunpack.c.l.b16 %v1142
        %v1147 = vpack.c.b16 %v1146, %v1027
        %vm1148 = vsmask.f32 5376
        %v1150 = vshrl.u32 %v1029, 16
        %v1152 = vrot.slane %v1150, 2
        %v1153 = vshll.u32 %v1029, 16
        %v1155 = vrot.slane %v1153, 3
        %v1156 = vor.u32 %v1152, %v1155
        %v1158 = vshrl.u32 %v1030, 16
        %v1160 = vrot.slane %v1158, 2
        %v1161 = vshll.u32 %v1030, 16
        %v1163 = vrot.slane %v1161, 3
        %v1164 = vor.u32 %v1160, %v1163
        %v1165 = vsel %vm1148, %v1156, %v1164
        %v1167 = vshrl.u32 %v1031, 16
        %v1169 = vrot.slane %v1167, 2
        %v1170 = vshll.u32 %v1031, 16
        %v1172 = vrot.slane %v1170, 3
        %v1173 = vor.u32 %v1169, %v1172
        %v1174 = vsel %vm1148, %v1164, %v1173
        %v1176 = vshrl.u32 %v1032, 16
        %v1178 = vrot.slane %v1176, 2
        %v1179 = vshll.u32 %v1032, 16
        %v1181 = vrot.slane %v1179, 3
        %v1182 = vor.u32 %v1178, %v1181
        %v1183 = vsel %vm1148, %v1173, %v1182
        %v1185 = vshrl.u32 %v1147, 16
        %v1187 = vrot.slane %v1185, 2
        %v1188 = vshll.u32 %v1147, 16
        %v1190 = vrot.slane %v1188, 3
        %v1191 = vor.u32 %v1187, %v1190
        %v1192 = vsel %vm1148, %v1182, %v1191
        %v1194 = vsel %vm293, %v1165, 0
        %v1197 = vsel %vm293, %v1174, 0
        %v1200 = vsel %vm293, %v1183, 0
        %v1203 = vsel %vm293, %v1192, 0
        %v1206 = vsel %vm293, %v1191, 0
        %v1209 = vsel %vm309, %v1144, 0
        %1211 = vmatprep.subr.bf16.mxu0 0
        %1212 = vmatpush1.bf16.msra.mxu0 %v1209
        %1213 = vmatprep.subr.bf16.mxu0 0
        %1214 = vmatpush1.bf16.msra.mxu0 0
        %1215 = vmatprep.subr.bf16.mxu0 0
        %1216 = vmatpush1.bf16.msra.mxu0 0
        %1217 = vmatprep.subr.bf16.mxu0 0
        %1218 = vmatpush1.bf16.msra.mxu0 0
        %1219 = vmatprep.subr.bf16.mxu0 0
        %1220 = vmatpush1.bf16.msra.mxu0 0
        %1221 = vmatprep.subr.bf16.mxu0 0
        %1222 = vmatpush1.bf16.msra.mxu0 0
        %1223 = vmatprep.subr.bf16.mxu0 0
        %1224 = vmatpush1.bf16.msra.mxu0 0
        %1225 = vmatprep.subr.bf16.mxu0 0
        %1226 = vmatpush1.bf16.msra.mxu0 0
        %1227 = vmatprep.subr.bf16.mxu0 0
        %1228 = vmatpush1.bf16.msra.mxu0 0
        %1229 = vmatprep.subr.bf16.mxu0 0
        %1230 = vmatpush1.bf16.msra.mxu0 0
        %1231 = vmatprep.subr.bf16.mxu0 0
        %1232 = vmatpush1.bf16.msra.mxu0 0
        %1233 = vmatprep.subr.bf16.mxu0 0
        %1234 = vmatpush1.bf16.msra.mxu0 0
        %1235 = vmatprep.subr.bf16.mxu0 0
        %1236 = vmatpush1.bf16.msra.mxu0 0
        %1237 = vmatprep.subr.bf16.mxu0 0
        %1238 = vmatpush1.bf16.msra.mxu0 0
        %1239 = vmatprep.subr.bf16.mxu0 0
        %1240 = vmatpush1.bf16.msra.mxu0 0
        %1241 = vmatprep.subr.bf16.mxu0 0
        %1242 = vmatpush1.bf16.msra.mxu0 0
        %1243 = vmatprep.mubr.bf16.mxu0 0
        %1244 = vmatmul.mubr.bf16.gmra.mrb[0].mxu0 %v1194
        %v1245 = vpop.f32.mrb[0].mxu0
        %v1246 = vadd.f32 0.0, %v1245
        %v1247 = vpop.f32.mrb[0].mxu0
        %v1248 = vpop.f32.mrb[0].mxu0
        %v1249 = vadd.f32 0.0, %v1248
        %v1250 = vpop.f32.mrb[0].mxu0
        %1251 = vmatprep.mubr.bf16.mxu0 0
        %1252 = vmatmul.mubr.bf16.gmra.mrb[0].mxu0 %v1197
        %v1253 = vpop.f32.mrb[0].mxu0
        %v1254 = vadd.f32 0.0, %v1253
        %v1255 = vpop.f32.mrb[0].mxu0
        %v1256 = vpop.f32.mrb[0].mxu0
        %v1257 = vadd.f32 0.0, %v1256
        %v1258 = vpop.f32.mrb[0].mxu0
        %1259 = vmatprep.mubr.bf16.mxu0 0
        %1260 = vmatmul.mubr.bf16.gmra.mrb[0].mxu0 %v1200
        %v1261 = vpop.f32.mrb[0].mxu0
        %v1262 = vadd.f32 0.0, %v1261
        %v1263 = vpop.f32.mrb[0].mxu0
        %v1264 = vpop.f32.mrb[0].mxu0
        %v1265 = vadd.f32 0.0, %v1264
        %v1266 = vpop.f32.mrb[0].mxu0
        %1267 = vmatprep.mubr.bf16.mxu0 0
        %1268 = vmatmul.mubr.bf16.gmra.mrb[0].mxu0 %v1203
        %v1269 = vpop.f32.mrb[0].mxu0
        %v1270 = vadd.f32 0.0, %v1269
        %v1271 = vpop.f32.mrb[0].mxu0
        %v1272 = vpop.f32.mrb[0].mxu0
        %v1273 = vadd.f32 0.0, %v1272
        %v1274 = vpop.f32.mrb[0].mxu0
        %1275 = vmatprep.mubr.bf16.mxu0 0
        %1276 = vmatmul.mubr.bf16.gmra.mrb[0].mxu0 %v1206
        %v1277 = vpop.f32.mrb[0].mxu0
        %v1278 = vadd.f32 0.0, %v1277
        %v1279 = vpop.f32.mrb[0].mxu0
        %v1280 = vpop.f32.mrb[0].mxu0
        %v1281 = vpop.f32.mrb[0].mxu0
        %1282 = vdwg.mxu0
        %v1283 = vadd.f32 %v1133, %v1246
        %v1284 = vadd.f32 %v1134, %v1249
        %v1285 = vadd.f32 %v1135, %v1254
        %v1286 = vadd.f32 %v1136, %v1257
        %v1287 = vadd.f32 %v1137, %v1262
        %v1288 = vadd.f32 %v1138, %v1265
        %v1289 = vadd.f32 %v1139, %v1270
        %v1290 = vadd.f32 %v1140, %v1273
        %v1291 = vadd.f32 %v1141, %v1278
        %v1292 = vld [vmem:[%s206 + $0x10] sm:$0x8]
        %s1293 = scalar_lea.vmem %s210, 16
        %v1294 = vld [vmem:[%s1293] sm:$0x3]
        %v1296 = vunpack.c.l.b16 %v1292
        %v1297 = vpack.c.b16 %v1020, %v1296
        %vm1298 = vcmask 1044480
        %v1299 = vrot.slane %v1297, 3
        %v1300 = vrot.slane %v1030, 3
        %v1301 = vsel %vm1298, %v1299, %v1300
        %v1302 = vrot.slane %v1031, 3
        %v1303 = vsel %vm1298, %v1300, %v1302
        %v1304 = vrot.slane %v1032, 3
        %v1305 = vsel %vm1298, %v1302, %v1304
        %v1306 = vrot.slane %v1147, 3
        %v1307 = vsel %vm1298, %v1304, %v1306
        %v1309 = vsel %vm293, %v1301, 0
        %v1312 = vsel %vm293, %v1303, 0
        %v1315 = vsel %vm293, %v1305, 0
        %v1318 = vsel %vm293, %v1307, 0
        %v1321 = vsel %vm293, %v1306, 0
        %v1324 = vsel %vm309, %v1294, 0
        %1326 = vmatprep.subr.bf16.mxu0 0
        %1327 = vmatpush1.bf16.msra.mxu0 %v1324
        %1328 = vmatprep.subr.bf16.mxu0 0
        %1329 = vmatpush1.bf16.msra.mxu0 0
        %1330 = vmatprep.subr.bf16.mxu0 0
        %1331 = vmatpush1.bf16.msra.mxu0 0
        %1332 = vmatprep.subr.bf16.mxu0 0
        %1333 = vmatpush1.bf16.msra.mxu0 0
        %1334 = vmatprep.subr.bf16.mxu0 0
        %1335 = vmatpush1.bf16.msra.mxu0 0
        %1336 = vmatprep.subr.bf16.mxu0 0
        %1337 = vmatpush1.bf16.msra.mxu0 0
        %1338 = vmatprep.subr.bf16.mxu0 0
        %1339 = vmatpush1.bf16.msra.mxu0 0
        %1340 = vmatprep.subr.bf16.mxu0 0
        %1341 = vmatpush1.bf16.msra.mxu0 0
        %1342 = vmatprep.subr.bf16.mxu0 0
        %1343 = vmatpush1.bf16.msra.mxu0 0
        %1344 = vmatprep.subr.bf16.mxu0 0
        %1345 = vmatpush1.bf16.msra.mxu0 0
        %1346 = vmatprep.subr.bf16.mxu0 0
        %1347 = vmatpush1.bf16.msra.mxu0 0
        %1348 = vmatprep.subr.bf16.mxu0 0
        %1349 = vmatpush1.bf16.msra.mxu0 0
        %1350 = vmatprep.subr.bf16.mxu0 0
        %1351 = vmatpush1.bf16.msra.mxu0 0
        %1352 = vmatprep.subr.bf16.mxu0 0
        %1353 = vmatpush1.bf16.msra.mxu0 0
        %1354 = vmatprep.subr.bf16.mxu0 0
        %1355 = vmatpush1.bf16.msra.mxu0 0
        %1356 = vmatprep.subr.bf16.mxu0 0
        %1357 = vmatpush1.bf16.msra.mxu0 0
        %1358 = vmatprep.mubr.bf16.mxu0 0
        %1359 = vmatmul.mubr.bf16.gmra.mrb[0].mxu0 %v1309
        %v1360 = vpop.f32.mrb[0].mxu0
        %v1361 = vadd.f32 0.0, %v1360
        %v1362 = vpop.f32.mrb[0].mxu0
        %v1363 = vpop.f32.mrb[0].mxu0
        %v1364 = vadd.f32 0.0, %v1363
        %v1365 = vpop.f32.mrb[0].mxu0
        %1366 = vmatprep.mubr.bf16.mxu0 0
        %1367 = vmatmul.mubr.bf16.gmra.mrb[0].mxu0 %v1312
        %v1368 = vpop.f32.mrb[0].mxu0
        %v1369 = vadd.f32 0.0, %v1368
        %v1370 = vpop.f32.mrb[0].mxu0
        %v1371 = vpop.f32.mrb[0].mxu0
        %v1372 = vadd.f32 0.0, %v1371
        %v1373 = vpop.f32.mrb[0].mxu0
        %1374 = vmatprep.mubr.bf16.mxu0 0
        %1375 = vmatmul.mubr.bf16.gmra.mrb[0].mxu0 %v1315
        %v1376 = vpop.f32.mrb[0].mxu0
        %v1377 = vadd.f32 0.0, %v1376
        %v1378 = vpop.f32.mrb[0].mxu0
        %v1379 = vpop.f32.mrb[0].mxu0
        %v1380 = vadd.f32 0.0, %v1379
        %v1381 = vpop.f32.mrb[0].mxu0
        %1382 = vmatprep.mubr.bf16.mxu0 0
        %1383 = vmatmul.mubr.bf16.gmra.mrb[0].mxu0 %v1318
        %v1384 = vpop.f32.mrb[0].mxu0
        %v1385 = vadd.f32 0.0, %v1384
        %v1386 = vpop.f32.mrb[0].mxu0
        %v1387 = vpop.f32.mrb[0].mxu0
        %v1388 = vadd.f32 0.0, %v1387
        %v1389 = vpop.f32.mrb[0].mxu0
        %1390 = vmatprep.mubr.bf16.mxu0 0
        %1391 = vmatmul.mubr.bf16.gmra.mrb[0].mxu0 %v1321
        %v1392 = vpop.f32.mrb[0].mxu0
        %v1393 = vadd.f32 0.0, %v1392
        %v1394 = vpop.f32.mrb[0].mxu0
        %v1395 = vpop.f32.mrb[0].mxu0
        %v1396 = vpop.f32.mrb[0].mxu0
        %1397 = vdwg.mxu0
        %v1398 = vadd.f32 %v1283, %v1361
        %v1399 = vadd.f32 %v1284, %v1364
        %v1400 = vadd.f32 %v1285, %v1369
        %v1401 = vadd.f32 %v1286, %v1372
        %v1402 = vadd.f32 %v1287, %v1377
        %v1403 = vadd.f32 %v1288, %v1380
        %v1404 = vadd.f32 %v1289, %v1385
        %v1405 = vadd.f32 %v1290, %v1388
        %v1406 = vadd.f32 %v1291, %v1393
        %v1407 = vld [vmem:[%s213] sm:$0x1]
        %v1409 = vlaneseq
        %v1410 = vshrl.u32 %v1409, 7
        %v1411 = vsub.s32 0, %v1410
        %v1412 = vrot.slane %v1407, %v1411
        %v1414 = vadd.f32 %v1398, %v1412
        %v1415 = vadd.f32 %v1399, %v1412
        %v1416 = vadd.f32 %v1400, %v1412
        %v1417 = vadd.f32 %v1401, %v1412
        %v1418 = vadd.f32 %v1402, %v1412
        %v1419 = vadd.f32 %v1403, %v1412
        %v1420 = vadd.f32 %v1404, %v1412
        %v1421 = vadd.f32 %v1405, %v1412
        %v1422 = vadd.f32 %v1406, %v1412
        %v1423 = vmax.f32 %v1414, 0.0
        %v1424 = vmax.f32 %v1415, 0.0
        %v1425 = vmax.f32 %v1416, 0.0
        %v1426 = vmax.f32 %v1417, 0.0
        %v1427 = vmax.f32 %v1418, 0.0
        %v1428 = vmax.f32 %v1419, 0.0
        %v1429 = vmax.f32 %v1420, 0.0
        %v1430 = vmax.f32 %v1421, 0.0
        %v1431 = vmax.f32 %v1422, 0.0
        %v1432 = vpack.c.bf16 %v1424, %v1423
        %v1433 = vpack.c.bf16 %v1426, %v1425
        %v1434 = vpack.c.bf16 %v1428, %v1427
        %v1435 = vpack.c.bf16 %v1430, %v1429
        %v1436 = vpack.c.bf16 %v1431, %v1431
        %v1442 = vunpack.c.l.b16 %v1432
        %v1443 = vunpack.c.h.b16 %v1432
        %v1444 = vunpack.c.l.b16 %v1433
        %v1445 = vunpack.c.h.b16 %v1433
        %v1446 = vunpack.c.l.b16 %v1434
        %v1447 = vunpack.c.h.b16 %v1434
        %v1448 = vunpack.c.l.b16 %v1435
        %v1449 = vunpack.c.h.b16 %v1435
        %v1450 = vunpack.c.l.b16 %v1436
        %v1451 = vpack.c.b16 %v1442, %v1442
        %v1452 = vpack.c.b16 %v1443, %v1443
        %v1453 = vpack.c.b16 %v1444, %v1444
        %v1454 = vpack.c.b16 %v1445, %v1445
        %v1455 = vpack.c.b16 %v1446, %v1446
        %v1456 = vpack.c.b16 %v1447, %v1447
        %v1457 = vpack.c.b16 %v1448, %v1448
        %v1458 = vpack.c.b16 %v1449, %v1449
        %v1459 = vpack.c.b16 %v1450, %v1450
        %1469 = vst [vmem:[%s201] sm:$0xf] %v1451
        %1470 = vst [vmem:[%s201 + $0x4] sm:$0xf] %v1452
        %1471 = vst [vmem:[%s201 + $0x8] sm:$0xf] %v1453
        %1472 = vst [vmem:[%s201 + $0xc] sm:$0xf] %v1454
        %1473 = vst [vmem:[%s201 + $0x10] sm:$0xf] %v1455
        %1474 = vst [vmem:[%s201 + $0x14] sm:$0xf] %v1456
        %1475 = vst [vmem:[%s201 + $0x18] sm:$0xf] %v1457
        %1476 = vst [vmem:[%s201 + $0x1c] sm:$0xf] %v1458
        %1477 = vst [vmem:[%s201 + $0x20] sm:$0xf] %v1459
        %s1478 = sand.u32 %s117, 1
        %s1479 = scalar_lea.sflag [#allocation3], %s1478
        %s1480 = sand.u32 %s117, 1
        %s1481 = smul.addr %s1480, 36
        %s1482 = scalar_lea.vmem [#allocation2], %s1481
        // Predicated region
        $region33: #{tpu_custom_call.1} parent=31 // pred_check
          %p1483 = pneg %p127
        $region34: #{tpu_custom_call.1} parent=31 // pred_check_branch
          %1485 = sbr.rel (%p1483) target = $region36
        $region35: #{tpu_custom_call.1} parent=31 // pred_region
          %s1487 = ssub.s32 576, 576
          %1488 = vsyncadd %s1479, %s1487
          %s1489 = smul.addr %s21, 9
          %s1490 = sadd.s32 %s22, %s1489
          %s1491 = smul.addr %s1490, 64
          %s1492 = scalar_lea.hbm %s3, %s1491
          %s1493 = sshll.u32 %s1482, 4
          %s1494 = int_to_ptr.vmem [resolvable:$true] %s1493
          %1499 = dma.vmem_to_hbm [thread:$0]  %s1494, 576, %s1492, %s1479, 64, 64, 4
        $region36: #{tpu_custom_call.1} parent=31 // pred_fallthru
          _
      $region32: #{tpu_custom_call.1} parent=5 // pred_fallthru
        _
      %p1500 = scmp.le.s32.totalorder 2, %s12
      // Predicated region
      $region37: #{tpu_custom_call.1} parent=5 // pred_check
        %p1501 = pneg %p1500
      $region38: #{tpu_custom_call.1} parent=5 // pred_check_branch
        %1503 = sbr.rel (%p1501) target = $region40
      $region39: #{tpu_custom_call.1} parent=5 // pred_region
        %s1504 = ssub.s32 %s12, 2
        // Predicated region
        $region41: #{tpu_custom_call.1} parent=39 // pred_check
          %p1505 = pneg %p133
        $region42: #{tpu_custom_call.1} parent=39 // pred_check_branch
          %1507 = sbr.rel (%p1505) target = $region44
        $region43: #{tpu_custom_call.1} parent=39 // pred_region
          %s1508 = sand.u32 %s118, 1
          %s1509 = scalar_lea.sflag [#allocation3], %s1508
          %s1510 = sand.u32 %s118, 1
          %s1511 = smul.addr %s1510, 36
          %s1512 = scalar_lea.vmem [#allocation2], %s1511
          %1513 = dma.done %s1509, 576
        $region44: #{tpu_custom_call.1} parent=39 // pred_fallthru
          _
      $region40: #{tpu_custom_call.1} parent=5 // pred_fallthru
        _
    $region6: #{tpu_custom_call.1} parent=1 // loop_footer
      %s16 = sadd.s32 1, %s12
    $region7: #{tpu_custom_call.1} parent=1 // loop_footer_branch
      %11 = sbr.rel target = $region3
    $region8: #{tpu_custom_call.1} parent=1 // loop_exit
      _
    %1514 = vsyncpa [#allocation3], 1
    %s1515 = scalar_lea.sflag [#allocation3], 1
    %1516 = vsyncpa %s1515, 1

</llo_original>
